<compile_context>
chip_gen: v7x
topology: tpu7x:2x2x1
jax: 0.10.0
libtpu: 0.0.40
codegen_flags: <defaults>
</compile_context>

<pallas_src>
import functools

import jax
import jax.numpy as jnp
from jax import lax
from jax.experimental import pallas as pl
from jax.experimental.pallas import tpu as pltpu
import numpy as np


# -----------------------------------------------------------------------------
# Kernel: per-row-tile  y = LayerNorm(x @ Wt) * gamma + beta
# -----------------------------------------------------------------------------
def _reduce_ln_kernel(x_ref, wt_ref, g_ref, b_ref, out_ref, *, eps):
    # (tile_n, Cin) @ (Cin, Cout) on the MXU, f32 accumulation.
    h = jnp.dot(x_ref[...], wt_ref[...], preferred_element_type=jnp.float32)
    # LayerNorm over the channel (lane) axis, f32 math.
    mu = jnp.mean(h, axis=-1, keepdims=True)
    var = jnp.mean((h - mu) ** 2, axis=-1, keepdims=True)
    y = (h - mu) * lax.rsqrt(var + eps) * g_ref[...] + b_ref[...]
    out_ref[...] = y.astype(out_ref.dtype)


# -----------------------------------------------------------------------------
# Wrapper
# -----------------------------------------------------------------------------
def stage_reduction_block(x, w, ln_w, ln_b, *, tile_n=512, eps=1e-5):
    """x: (N, Cin), w: (Cout, Cin) [nn.Linear layout], ln_w/ln_b: (Cout,)."""
    N, Cin = x.shape
    Cout = w.shape[0]

    # Pre-transpose the weight once on the host side (no in-kernel .T).
    wt = jnp.asarray(w).T                                   # (Cin, Cout)
    g = jnp.asarray(ln_w).reshape(1, Cout)
    b = jnp.asarray(ln_b).reshape(1, Cout)

    # Pad rows so the grid covers every row (remainder is not dropped).
    n_tiles = pl.cdiv(N, tile_n)
    n_pad = n_tiles * tile_n
    if n_pad != N:
        x = jnp.pad(x, ((0, n_pad - N), (0, 0)))

    kernel = functools.partial(_reduce_ln_kernel, eps=eps)
    out = pl.pallas_call(
        kernel,
        out_shape=jax.ShapeDtypeStruct((n_pad, Cout), x.dtype),
        grid=(n_tiles,),
        in_specs=[
            pl.BlockSpec((tile_n, Cin), lambda i: (i, 0)),   # row tile of x
            pl.BlockSpec((Cin, Cout), lambda i: (0, 0)),     # full W^T (resident)
            pl.BlockSpec((1, Cout), lambda i: (0, 0)),       # LN gamma
            pl.BlockSpec((1, Cout), lambda i: (0, 0)),       # LN beta
        ],
        out_specs=pl.BlockSpec((tile_n, Cout), lambda i: (i, 0)),
        compiler_params=pltpu.CompilerParams(
            dimension_semantics=("parallel",),
            vmem_limit_bytes=64 * 1024 * 1024,
        ),
    )(x, wt, g, b)
    return out[:N]


# -----------------------------------------------------------------------------
# Pure-JAX reference for sanity checking
# -----------------------------------------------------------------------------
def reference(x, w, ln_w, ln_b, eps=1e-5):
    h = x @ w.T
    mu = jnp.mean(h, axis=-1, keepdims=True)
    var = jnp.mean((h - mu) ** 2, axis=-1, keepdims=True)
    return (h - mu) / jnp.sqrt(var + eps) * ln_w + ln_b


# -----------------------------------------------------------------------------
if __name__ == "__main__":
    # Small shapes consistent with the module: a DSVT stage reduction that maps
    # voxel features 192 -> 128 channels.  N is NOT a multiple of the tile to
    # exercise the padding path.
    N = 1000
    input_channel = 192
    output_channel = 128          # lane-dense output (full 128-lane stores)

    key = jax.random.PRNGKey(0)
    k_x, k_w, k_g, k_b = jax.random.split(key, 4)

    x = jax.random.normal(k_x, (N, input_channel), jnp.float32)
    w = (0.05 * jax.random.normal(k_w, (output_channel, input_channel))
         ).astype(jnp.float32)                       # nn.Linear weight (out,in)
    ln_w = 1.0 + 0.05 * jax.random.normal(k_g, (output_channel,), jnp.float32)
    ln_b = 0.05 * jax.random.normal(k_b, (output_channel,), jnp.float32)

    out = stage_reduction_block(x, w, ln_w, ln_b, tile_n=512)
    out = jax.block_until_ready(out)

    ref = reference(x, w, ln_w, ln_b)
    np.testing.assert_allclose(np.asarray(out), np.asarray(ref),
                               rtol=2e-3, atol=2e-3)

    print("KERNEL_OK")
</pallas_src>

<mosaic_0001>
module attributes {stable_mosaic.version = 11 : i64} {
  func.func @_reduce_ln_kernel(%arg0: i32, %arg1: memref<512x192xf32, #tpu.memory_space<vmem>>, %arg2: memref<192x128xf32, #tpu.memory_space<vmem>>, %arg3: memref<1x128xf32, #tpu.memory_space<vmem>>, %arg4: memref<1x128xf32, #tpu.memory_space<vmem>>, %arg5: memref<512x128xf32, #tpu.memory_space<vmem>>) attributes {dimension_semantics = [#tpu.dimension_semantics<parallel>], iteration_bounds = array<i64: 2>, scalar_prefetch = 0 : i64, scratch_operands = 0 : i64, tpu.core_type = #tpu.core_type<tc>, window_params = [{transform_indices = @transform_0, window_bounds = array<i64: 512, 192>}, {pipeline_mode = #tpu.pipeline_mode<synchronous>, transform_indices = @transform_1, window_bounds = array<i64: 192, 128>}, {pipeline_mode = #tpu.pipeline_mode<synchronous>, transform_indices = @transform_2, window_bounds = array<i64: 1, 128>}, {pipeline_mode = #tpu.pipeline_mode<synchronous>, transform_indices = @transform_3, window_bounds = array<i64: 1, 128>}, {transform_indices = @transform_4, window_bounds = array<i64: 512, 128>}]} {
    %c0 = arith.constant 0 : index
    %c0_0 = arith.constant 0 : index
    %0 = vector.load %arg1[%c0, %c0_0] : memref<512x192xf32, #tpu.memory_space<vmem>>, vector<512x192xf32>
    %c0_1 = arith.constant 0 : index
    %c0_2 = arith.constant 0 : index
    %1 = vector.load %arg2[%c0_1, %c0_2] : memref<192x128xf32, #tpu.memory_space<vmem>>, vector<192x128xf32>
    %cst = arith.constant dense<0.000000e+00> : vector<512x128xf32>
    %2 = tpu.matmul %0, %1, %cst {dimension_numbers = #tpu.dot_dimension_numbers<[1], [0], [0], [1], [0, 0, 1, 1], [], []>} : vector<512x192xf32>, vector<192x128xf32>, vector<512x128xf32> -> vector<512x128xf32>
    %cst_3 = arith.constant dense<0.000000e+00> : vector<512xf32>
    %3 = vector.multi_reduction <add>, %2, %cst_3 [1] : vector<512x128xf32> to vector<512xf32>
    %4 = vector.shape_cast %3 : vector<512xf32> to vector<512x1xf32>
    %cst_4 = arith.constant 1.280000e+02 : f32
    %5 = vector.broadcast %cst_4 : f32 to vector<512x1xf32>
    %6 = arith.divf %4, %5 : vector<512x1xf32>
    %7 = vector.broadcast %6 : vector<512x1xf32> to vector<512x128xf32>
    %8 = arith.subf %2, %7 : vector<512x128xf32>
    %9 = arith.mulf %8, %8 : vector<512x128xf32>
    %cst_5 = arith.constant dense<0.000000e+00> : vector<512xf32>
    %10 = vector.multi_reduction <add>, %9, %cst_5 [1] : vector<512x128xf32> to vector<512xf32>
    %11 = vector.shape_cast %10 : vector<512xf32> to vector<512x1xf32>
    %cst_6 = arith.constant 1.280000e+02 : f32
    %12 = vector.broadcast %cst_6 : f32 to vector<512x1xf32>
    %13 = arith.divf %11, %12 : vector<512x1xf32>
    %14 = vector.broadcast %6 : vector<512x1xf32> to vector<512x128xf32>
    %15 = arith.subf %2, %14 : vector<512x128xf32>
    %cst_7 = arith.constant 9.99999974E-6 : f32
    %16 = vector.broadcast %cst_7 : f32 to vector<512x1xf32>
    %17 = arith.addf %13, %16 : vector<512x1xf32>
    %18 = math.rsqrt %17 : vector<512x1xf32>
    %19 = vector.broadcast %18 : vector<512x1xf32> to vector<512x128xf32>
    %20 = arith.mulf %15, %19 : vector<512x128xf32>
    %c0_8 = arith.constant 0 : index
    %c0_9 = arith.constant 0 : index
    %21 = vector.load %arg3[%c0_8, %c0_9] : memref<1x128xf32, #tpu.memory_space<vmem>>, vector<1x128xf32>
    %22 = vector.broadcast %21 : vector<1x128xf32> to vector<512x128xf32>
    %23 = arith.mulf %20, %22 : vector<512x128xf32>
    %c0_10 = arith.constant 0 : index
    %c0_11 = arith.constant 0 : index
    %24 = vector.load %arg4[%c0_10, %c0_11] : memref<1x128xf32, #tpu.memory_space<vmem>>, vector<1x128xf32>
    %25 = vector.broadcast %24 : vector<1x128xf32> to vector<512x128xf32>
    %26 = arith.addf %23, %25 : vector<512x128xf32>
    %c0_12 = arith.constant 0 : index
    %c0_13 = arith.constant 0 : index
    %27 = vector.load %arg5[%c0_12, %c0_13] : memref<512x128xf32, #tpu.memory_space<vmem>>, vector<512x128xf32>
    tpu.vector_store %arg5[%c0_12, %c0_13], %26 {strides = array<i32>} : memref<512x128xf32, #tpu.memory_space<vmem>>, vector<512x128xf32>,
    return
  }
  func.func @transform_0(%arg0: i32) -> (i32, i32) {
    %c0_i32 = arith.constant 0 : i32
    %c0_i32_0 = arith.constant 0 : i32
    return %arg0, %c0_i32 : i32, i32
  }
  func.func @transform_1(%arg0: i32) -> (i32, i32) {
    %c0_i32 = arith.constant 0 : i32
    %c0_i32_0 = arith.constant 0 : i32
    %c0_i32_1 = arith.constant 0 : i32
    return %c0_i32, %c0_i32_0 : i32, i32
  }
  func.func @transform_2(%arg0: i32) -> (i32, i32) {
    %c0_i32 = arith.constant 0 : i32
    %c0_i32_0 = arith.constant 0 : i32
    %c0_i32_1 = arith.constant 0 : i32
    return %c0_i32, %c0_i32_0 : i32, i32
  }
  func.func @transform_3(%arg0: i32) -> (i32, i32) {
    %c0_i32 = arith.constant 0 : i32
    %c0_i32_0 = arith.constant 0 : i32
    %c0_i32_1 = arith.constant 0 : i32
    return %c0_i32, %c0_i32_0 : i32, i32
  }
  func.func @transform_4(%arg0: i32) -> (i32, i32) {
    %c0_i32 = arith.constant 0 : i32
    %c0_i32_0 = arith.constant 0 : i32
    return %arg0, %c0_i32 : i32, i32
  }
}

</mosaic_0001>

<llo_original>
// kernel: tpu_custom_call.1
$region0: #{tpu_custom_call.1}
  #allocation0 [shape = 'u32[]', space=smem, size = 0x4, offset = 0x4, fixed_abs, tag = 'smem constant byte address 0x4 - core index']
  #allocation1 [shape = 'u32[144,128]{1,0:T(1,128)}', space=vmem, size = 0x12000, scoped, tag = 'internal scratch']
  %s0 = inlined_call_operand.hbm [shape: f32[1024,192], index: 0, kind: input, shape index: {}]
  %s1 = inlined_call_operand.hbm [shape: f32[192,128], index: 1, kind: input, shape index: {}]
  %s2 = inlined_call_operand.hbm [shape: f32[1,128], index: 2, kind: input, shape index: {}]
  %s3 = inlined_call_operand.hbm [shape: f32[1,128], index: 3, kind: input, shape index: {}]
  %s4 = inlined_call_operand.hbm [shape: f32[1024,128], index: 4, kind: output, shape index: {}]
  %s5 = sld [smem:[#allocation0]]
  $region65: #{tpu_custom_call.1} parent=0
    _
  %s7 = ssub.s32 1, %s5
  %s8 = scalar_select 0, %s7, %s5
  $region1: #{tpu_custom_call.1} parent=0
    #allocation2 [shape = 'u8[1048576]{0}', space=vmem, size = 0x100000, scoped, tag = 'input window, operand 0']
    #allocation3 [shape = 's32[2]{0}', space=sflag, size = 0x8, scoped, tag = 'scoped memory for tpu_custom_call.1']
    #allocation4 [shape = 's32[2]{0}', space=sflag, size = 0x8, scoped, tag = 'scoped memory for tpu_custom_call.1']
    #allocation5 [shape = 'u8[98304]{0}', space=vmem, size = 0x18000, scoped, tag = 'input window, operand 1, single buffered']
    #allocation6 [shape = 's32[1]{0}', space=sflag, size = 0x4, scoped, tag = 'scoped memory for tpu_custom_call.1']
    #allocation7 [shape = 'u8[512]{0}', space=vmem, size = 0x400, scoped, tag = 'input window, operand 2, single buffered']
    #allocation8 [shape = 'u8[512]{0}', space=vmem, size = 0x400, scoped, tag = 'input window, operand 3, single buffered']
    #allocation9 [shape = 's32[1]{0}', space=sflag, size = 0x4, scoped, tag = 'scoped memory for tpu_custom_call.1']
    #allocation10 [shape = 'u8[524288]{0}', space=vmem, size = 0x80000, scoped, tag = 'output window, operand 0']
    %9 = vsyncpa [#allocation3], 0
    %s10 = scalar_lea.sflag [#allocation3], 1
    %11 = vsyncpa %s10, 0
    %12 = vsyncpa [#allocation6], 0
    %13 = vsyncpa [#allocation9], 0
    %14 = vsyncpa [#allocation4], 0
    %s15 = scalar_lea.sflag [#allocation4], 1
    %16 = vsyncpa %s15, 0
    loop: start=0, step=1, limit=4
    $region2: #{tpu_custom_call.1} parent=1 // loop_pre_header
      _
    $region3: #{tpu_custom_call.1} parent=1 // loop_header
      %s18 = sphi 0, %s22
      %p19 = scmp.ge.s32.totalorder %s18, 4
      %s28 = sphi 0, %s30
      %s31 = sphi 0, %s28
      %s32 = sphi 0, %s31
      %s48 = sphi 0, %s32
      %s52 = sphi 0, %s52
      %s54 = sphi 0, %s52
      %s55 = sphi 0, %s54
      %s69 = sphi 0, %s55
      %s73 = sphi 0, %s73
      %s75 = sphi 0, %s73
      %s76 = sphi 0, %s75
      %s90 = sphi 0, %s76
      %s94 = sphi 0, %s94
      %s96 = sphi 0, %s94
      %s97 = sphi 0, %s96
      %s111 = sphi 0, %s97
      %s117 = sphi 0, %s119
      %s120 = sphi 0, %s117
      %s121 = sphi 0, %s120
      %s137 = sphi 0, %s121
    $region4: #{tpu_custom_call.1} parent=1 // loop_header_branch
      %21 = sbr.rel (%p19) target = $region8
    $region5: #{tpu_custom_call.1} parent=1 // loop_body
      %s23 = ssub.s32 %s18, 1
      %s24 = ssub.s32 %s18, 2
      %s25 = sadd.s32 %s18, 1
      %s26 = ssub.s32 %s18, %s25
      %p27 = scmp.eq.s32.totalorder %s26, 0
      %s29 = sadd.s32 %s28, 1
      %s30 = scalar_select %p27, %s28, %s29
      %p33 = pneg %p27
      %p34 = scmp.eq.s32.totalorder %s18, 1
      %p35 = por %p33, %p34
      %p36 = scmp.ne.s32.totalorder %s28, %s31
      %p37 = scmp.eq.s32.totalorder %s18, 0
      %p38 = por %p36, %p37
      %p39 = scmp.ne.s32.totalorder %s28, %s31
      %p40 = scmp.eq.s32.totalorder %s23, 1
      %p41 = por %p39, %p40
      %p42 = scmp.ne.s32.totalorder %s31, %s32
      %p43 = scmp.eq.s32.totalorder %s23, 0
      %p44 = por %p42, %p43
      %p45 = scmp.ne.s32.totalorder %s31, %s32
      %p46 = scmp.eq.s32.totalorder %s24, 1
      %p47 = por %p45, %p46
      %p49 = scmp.ne.s32.totalorder %s32, %s48
      %p50 = scmp.eq.s32.totalorder %s24, 0
      %p51 = por %p49, %p50
      %s53 = sadd.s32 %s52, 1
      %p56 = scmp.eq.s32.totalorder %s18, 1
      %p57 = scmp.ne.s32.totalorder %s52, %s54
      %p58 = scmp.eq.s32.totalorder %s18, 0
      %p59 = por %p57, %p58
      %p60 = scmp.ne.s32.totalorder %s52, %s54
      %p61 = scmp.eq.s32.totalorder %s23, 1
      %p62 = por %p60, %p61
      %p63 = scmp.ne.s32.totalorder %s54, %s55
      %p64 = scmp.eq.s32.totalorder %s23, 0
      %p65 = por %p63, %p64
      %p66 = scmp.ne.s32.totalorder %s54, %s55
      %p67 = scmp.eq.s32.totalorder %s24, 1
      %p68 = por %p66, %p67
      %p70 = scmp.ne.s32.totalorder %s55, %s69
      %p71 = scmp.eq.s32.totalorder %s24, 0
      %p72 = por %p70, %p71
      %s74 = sadd.s32 %s73, 1
      %p77 = scmp.eq.s32.totalorder %s18, 1
      %p78 = scmp.ne.s32.totalorder %s73, %s75
      %p79 = scmp.eq.s32.totalorder %s18, 0
      %p80 = por %p78, %p79
      %p81 = scmp.ne.s32.totalorder %s73, %s75
      %p82 = scmp.eq.s32.totalorder %s23, 1
      %p83 = por %p81, %p82
      %p84 = scmp.ne.s32.totalorder %s75, %s76
      %p85 = scmp.eq.s32.totalorder %s23, 0
      %p86 = por %p84, %p85
      %p87 = scmp.ne.s32.totalorder %s75, %s76
      %p88 = scmp.eq.s32.totalorder %s24, 1
      %p89 = por %p87, %p88
      %p91 = scmp.ne.s32.totalorder %s76, %s90
      %p92 = scmp.eq.s32.totalorder %s24, 0
      %p93 = por %p91, %p92
      %s95 = sadd.s32 %s94, 1
      %p98 = scmp.eq.s32.totalorder %s18, 1
      %p99 = scmp.ne.s32.totalorder %s94, %s96
      %p100 = scmp.eq.s32.totalorder %s18, 0
      %p101 = por %p99, %p100
      %p102 = scmp.ne.s32.totalorder %s94, %s96
      %p103 = scmp.eq.s32.totalorder %s23, 1
      %p104 = por %p102, %p103
      %p105 = scmp.ne.s32.totalorder %s96, %s97
      %p106 = scmp.eq.s32.totalorder %s23, 0
      %p107 = por %p105, %p106
      %p108 = scmp.ne.s32.totalorder %s96, %s97
      %p109 = scmp.eq.s32.totalorder %s24, 1
      %p110 = por %p108, %p109
      %p112 = scmp.ne.s32.totalorder %s97, %s111
      %p113 = scmp.eq.s32.totalorder %s24, 0
      %p114 = por %p112, %p113
      %s115 = ssub.s32 %s18, %s25
      %p116 = scmp.eq.s32.totalorder %s115, 0
      %s118 = sadd.s32 %s117, 1
      %s119 = scalar_select %p116, %s117, %s118
      %p122 = pneg %p116
      %p123 = scmp.eq.s32.totalorder %s18, 1
      %p124 = por %p122, %p123
      %p125 = scmp.ne.s32.totalorder %s117, %s120
      %p126 = scmp.eq.s32.totalorder %s18, 0
      %p127 = por %p125, %p126
      %p128 = scmp.ne.s32.totalorder %s117, %s120
      %p129 = scmp.eq.s32.totalorder %s23, 1
      %p130 = por %p128, %p129
      %p131 = scmp.ne.s32.totalorder %s120, %s121
      %p132 = scmp.eq.s32.totalorder %s23, 0
      %p133 = por %p131, %p132
      %p134 = scmp.ne.s32.totalorder %s120, %s121
      %p135 = scmp.eq.s32.totalorder %s24, 1
      %p136 = por %p134, %p135
      %p138 = scmp.ne.s32.totalorder %s121, %s137
      %p139 = scmp.eq.s32.totalorder %s24, 0
      %p140 = por %p138, %p139
      %p141 = scmp.le.s32.totalorder 1, %s18
      %p142 = scmp.lt.s32.totalorder %s18, 3
      %p143 = pnand %p141, %p142
      %p144 = pneg %p143
      // Predicated region
      $region9: #{tpu_custom_call.1} parent=5 // pred_check
        _
      $region10: #{tpu_custom_call.1} parent=5 // pred_check_branch
        %146 = sbr.rel (%p143) target = $region12
      $region11: #{tpu_custom_call.1} parent=5 // pred_region
        %s147 = ssub.s32 %s18, 1
        // Predicated region
        $region13: #{tpu_custom_call.1} parent=11 // pred_check
          %p148 = pneg %p65
        $region14: #{tpu_custom_call.1} parent=11 // pred_check_branch
          %150 = sbr.rel (%p148) target = $region16
        $region15: #{tpu_custom_call.1} parent=11 // pred_region
          %s152 = ssub.s32 3072, 3072
          %153 = vsyncadd [#allocation6], %s152
          %s154 = sshll.u32 [#allocation5], 4
          %s155 = int_to_ptr.vmem [resolvable:$true] %s154
          %160 = dma.hbm_to_vmem [thread:$0]  %s1, 3072, %s155, [#allocation6], 128, 128, 8
        $region16: #{tpu_custom_call.1} parent=11 // pred_fallthru
          _
        // Predicated region
        $region17: #{tpu_custom_call.1} parent=11 // pred_check
          %p161 = pneg %p86
        $region18: #{tpu_custom_call.1} parent=11 // pred_check_branch
          %163 = sbr.rel (%p161) target = $region20
        $region19: #{tpu_custom_call.1} parent=11 // pred_region
          %s165 = ssub.s32 16, 16
          %166 = vsyncadd [#allocation6], %s165
          %s168 = sshll.u32 [#allocation7], 4
          %s169 = int_to_ptr.vmem [resolvable:$true] %s168
          %171 = dma.hbm_to_vmem [thread:$0]  %s2, 16, %s169, [#allocation6]
        $region20: #{tpu_custom_call.1} parent=11 // pred_fallthru
          _
        // Predicated region
        $region21: #{tpu_custom_call.1} parent=11 // pred_check
          %p172 = pneg %p107
        $region22: #{tpu_custom_call.1} parent=11 // pred_check_branch
          %174 = sbr.rel (%p172) target = $region24
        $region23: #{tpu_custom_call.1} parent=11 // pred_region
          %s176 = ssub.s32 16, 16
          %177 = vsyncadd [#allocation9], %s176
          %s179 = sshll.u32 [#allocation8], 4
          %s180 = int_to_ptr.vmem [resolvable:$true] %s179
          %182 = dma.hbm_to_vmem [thread:$0]  %s3, 16, %s180, [#allocation9]
        $region24: #{tpu_custom_call.1} parent=11 // pred_fallthru
          _
      $region12: #{tpu_custom_call.1} parent=5 // pred_fallthru
        _
      %p183 = scmp.lt.s32.totalorder %s18, 2
      // Predicated region
      $region25: #{tpu_custom_call.1} parent=5 // pred_check
        %p184 = pneg %p183
      $region26: #{tpu_custom_call.1} parent=5 // pred_check_branch
        %186 = sbr.rel (%p184) target = $region28
      $region27: #{tpu_custom_call.1} parent=5 // pred_region
        // Predicated region
        $region29: #{tpu_custom_call.1} parent=27 // pred_check
          %p187 = pneg %p38
        $region30: #{tpu_custom_call.1} parent=27 // pred_check_branch
          %189 = sbr.rel (%p187) target = $region32
        $region31: #{tpu_custom_call.1} parent=27 // pred_region
          %s190 = sand.u32 %s28, 1
          %s191 = scalar_lea.sflag [#allocation3], %s190
          %s192 = sand.u32 %s28, 1
          %s193 = smul.addr %s192, 1024
          %s194 = scalar_lea.vmem [#allocation2], %s193
          %s195 = smul.u32 64, %s18
          %s197 = ssub.s32 16384, 16384
          %198 = vsyncadd %s191, %s197
          %s199 = smul.addr %s195, 2
          %s200 = smul.addr %s199, 128
          %s201 = scalar_lea.hbm %s0, %s200
          %s202 = sshll.u32 %s194, 4
          %s203 = int_to_ptr.vmem [resolvable:$true] %s202
          %208 = dma.hbm_to_vmem [thread:$0]  %s201, 16384, %s203, %s191, 256, 256, 16
        $region32: #{tpu_custom_call.1} parent=27 // pred_fallthru
          _
      $region28: #{tpu_custom_call.1} parent=5 // pred_fallthru
        _
      %p209 = scmp.le.s32.totalorder 1, %s18
      %p210 = scmp.lt.s32.totalorder %s18, 3
      %p211 = pnand %p209, %p210
      %p212 = pneg %p211
      // Predicated region
      $region33: #{tpu_custom_call.1} parent=5 // pred_check
        _
      $region34: #{tpu_custom_call.1} parent=5 // pred_check_branch
        %214 = sbr.rel (%p211) target = $region36
      $region35: #{tpu_custom_call.1} parent=5 // pred_region
        %s215 = ssub.s32 %s18, 1
        %s216 = sand.u32 %s31, 1
        %s217 = scalar_lea.sflag [#allocation3], %s216
        %s218 = sand.u32 %s31, 1
        %s219 = smul.addr %s218, 1024
        %s220 = scalar_lea.vmem [#allocation2], %s219
        // Predicated region
        $region37: #{tpu_custom_call.1} parent=35 // pred_check
          %p221 = pneg %p44
        $region38: #{tpu_custom_call.1} parent=35 // pred_check_branch
          %223 = sbr.rel (%p221) target = $region40
        $region39: #{tpu_custom_call.1} parent=35 // pred_region
          %224 = dma.done %s217, 16384
        $region40: #{tpu_custom_call.1} parent=35 // pred_fallthru
          _
        // Predicated region
        $region41: #{tpu_custom_call.1} parent=35 // pred_check
          %p225 = pneg %p65
        $region42: #{tpu_custom_call.1} parent=35 // pred_check_branch
          %227 = sbr.rel (%p225) target = $region44
        $region43: #{tpu_custom_call.1} parent=35 // pred_region
          %228 = dma.done [#allocation6], 3072
        $region44: #{tpu_custom_call.1} parent=35 // pred_fallthru
          _
        // Predicated region
        $region45: #{tpu_custom_call.1} parent=35 // pred_check
          %p229 = pneg %p86
        $region46: #{tpu_custom_call.1} parent=35 // pred_check_branch
          %231 = sbr.rel (%p229) target = $region48
        $region47: #{tpu_custom_call.1} parent=35 // pred_region
          %232 = dma.done [#allocation6], 16
        $region48: #{tpu_custom_call.1} parent=35 // pred_fallthru
          _
        // Predicated region
        $region49: #{tpu_custom_call.1} parent=35 // pred_check
          %p233 = pneg %p107
        $region50: #{tpu_custom_call.1} parent=35 // pred_check_branch
          %235 = sbr.rel (%p233) target = $region52
        $region51: #{tpu_custom_call.1} parent=35 // pred_region
          %236 = dma.done [#allocation9], 16
        $region52: #{tpu_custom_call.1} parent=35 // pred_fallthru
          _
        %s237 = sand.u32 %s31, 1
        %s238 = scalar_lea.sflag [#allocation3], %s237
        %s239 = sand.u32 %s31, 1
        %s240 = smul.addr %s239, 1024
        %s241 = scalar_lea.vmem [#allocation2], %s240
        %p242 = pneg %p44
        %p243 = pneg %p41
        %p244 = pneg %p65
        %p245 = pneg %p62
        %p246 = pneg %p86
        %p247 = pneg %p83
        %p248 = pneg %p107
        %p249 = pneg %p104
        %p250 = pneg %p133
        %p251 = pneg %p130
        %s252 = sand.u32 %s120, 1
        %s253 = scalar_lea.sflag [#allocation4], %s252
        %s254 = sand.u32 %s120, 1
        %s255 = smul.addr %s254, 512
        %s256 = scalar_lea.vmem [#allocation10], %s255
        %s257 = smul.u32 64, %s23
        %s258 = smul.u32 64, %s23
        %v259 = vld [vmem:[%s220] sm:$0xff]
        %v260 = vld [vmem:[%s220 + $0x8] sm:$0xff]
        %v261 = vld [vmem:[%s220 + $0x10] sm:$0xff]
        %v262 = vld [vmem:[%s220 + $0x18] sm:$0xff]
        %v263 = vld [vmem:[%s220 + $0x20] sm:$0xff]
        %v264 = vld [vmem:[%s220 + $0x28] sm:$0xff]
        %v265 = vld [vmem:[%s220 + $0x30] sm:$0xff]
        %v266 = vld [vmem:[%s220 + $0x38] sm:$0xff]
        %v267 = vld [vmem:[%s220 + $0x40] sm:$0xff]
        %v268 = vld [vmem:[%s220 + $0x48] sm:$0xff]
        %v269 = vld [vmem:[%s220 + $0x50] sm:$0xff]
        %v270 = vld [vmem:[%s220 + $0x58] sm:$0xff]
        %v271 = vld [vmem:[%s220 + $0x60] sm:$0xff]
        %v272 = vld [vmem:[%s220 + $0x68] sm:$0xff]
        %v273 = vld [vmem:[%s220 + $0x70] sm:$0xff]
        %v274 = vld [vmem:[%s220 + $0x78] sm:$0xff]
        %v275 = vld [vmem:[%s220 + $0x80] sm:$0xff]
        %v276 = vld [vmem:[%s220 + $0x88] sm:$0xff]
        %v277 = vld [vmem:[%s220 + $0x90] sm:$0xff]
        %v278 = vld [vmem:[%s220 + $0x98] sm:$0xff]
        %v279 = vld [vmem:[%s220 + $0xa0] sm:$0xff]
        %v280 = vld [vmem:[%s220 + $0xa8] sm:$0xff]
        %v281 = vld [vmem:[%s220 + $0xb0] sm:$0xff]
        %v282 = vld [vmem:[%s220 + $0xb8] sm:$0xff]
        %v283 = vld [vmem:[%s220 + $0xc0] sm:$0xff]
        %v284 = vld [vmem:[%s220 + $0xc8] sm:$0xff]
        %v285 = vld [vmem:[%s220 + $0xd0] sm:$0xff]
        %v286 = vld [vmem:[%s220 + $0xd8] sm:$0xff]
        %v287 = vld [vmem:[%s220 + $0xe0] sm:$0xff]
        %v288 = vld [vmem:[%s220 + $0xe8] sm:$0xff]
        %v289 = vld [vmem:[%s220 + $0xf0] sm:$0xff]
        %v290 = vld [vmem:[%s220 + $0xf8] sm:$0xff]
        %v291 = vld [vmem:[%s220 + $0x100] sm:$0xff]
        %v292 = vld [vmem:[%s220 + $0x108] sm:$0xff]
        %v293 = vld [vmem:[%s220 + $0x110] sm:$0xff]
        %v294 = vld [vmem:[%s220 + $0x118] sm:$0xff]
        %v295 = vld [vmem:[%s220 + $0x120] sm:$0xff]
        %v296 = vld [vmem:[%s220 + $0x128] sm:$0xff]
        %v297 = vld [vmem:[%s220 + $0x130] sm:$0xff]
        %v298 = vld [vmem:[%s220 + $0x138] sm:$0xff]
        %v299 = vld [vmem:[%s220 + $0x140] sm:$0xff]
        %v300 = vld [vmem:[%s220 + $0x148] sm:$0xff]
        %v301 = vld [vmem:[%s220 + $0x150] sm:$0xff]
        %v302 = vld [vmem:[%s220 + $0x158] sm:$0xff]
        %v303 = vld [vmem:[%s220 + $0x160] sm:$0xff]
        %v304 = vld [vmem:[%s220 + $0x168] sm:$0xff]
        %v305 = vld [vmem:[%s220 + $0x170] sm:$0xff]
        %v306 = vld [vmem:[%s220 + $0x178] sm:$0xff]
        %v307 = vld [vmem:[%s220 + $0x180] sm:$0xff]
        %v308 = vld [vmem:[%s220 + $0x188] sm:$0xff]
        %v309 = vld [vmem:[%s220 + $0x190] sm:$0xff]
        %v310 = vld [vmem:[%s220 + $0x198] sm:$0xff]
        %v311 = vld [vmem:[%s220 + $0x1a0] sm:$0xff]
        %v312 = vld [vmem:[%s220 + $0x1a8] sm:$0xff]
        %v313 = vld [vmem:[%s220 + $0x1b0] sm:$0xff]
        %v314 = vld [vmem:[%s220 + $0x1b8] sm:$0xff]
        %v315 = vld [vmem:[%s220 + $0x1c0] sm:$0xff]
        %v316 = vld [vmem:[%s220 + $0x1c8] sm:$0xff]
        %v317 = vld [vmem:[%s220 + $0x1d0] sm:$0xff]
        %v318 = vld [vmem:[%s220 + $0x1d8] sm:$0xff]
        %v319 = vld [vmem:[%s220 + $0x1e0] sm:$0xff]
        %v320 = vld [vmem:[%s220 + $0x1e8] sm:$0xff]
        %v321 = vld [vmem:[%s220 + $0x1f0] sm:$0xff]
        %v322 = vld [vmem:[%s220 + $0x1f8] sm:$0xff]
        %v323 = vld [vmem:[%s220 + $0x200] sm:$0xff]
        %v324 = vld [vmem:[%s220 + $0x208] sm:$0xff]
        %v325 = vld [vmem:[%s220 + $0x210] sm:$0xff]
        %v326 = vld [vmem:[%s220 + $0x218] sm:$0xff]
        %v327 = vld [vmem:[%s220 + $0x220] sm:$0xff]
        %v328 = vld [vmem:[%s220 + $0x228] sm:$0xff]
        %v329 = vld [vmem:[%s220 + $0x230] sm:$0xff]
        %v330 = vld [vmem:[%s220 + $0x238] sm:$0xff]
        %v331 = vld [vmem:[%s220 + $0x240] sm:$0xff]
        %v332 = vld [vmem:[%s220 + $0x248] sm:$0xff]
        %v333 = vld [vmem:[%s220 + $0x250] sm:$0xff]
        %v334 = vld [vmem:[%s220 + $0x258] sm:$0xff]
        %v335 = vld [vmem:[%s220 + $0x260] sm:$0xff]
        %v336 = vld [vmem:[%s220 + $0x268] sm:$0xff]
        %v337 = vld [vmem:[%s220 + $0x270] sm:$0xff]
        %v338 = vld [vmem:[%s220 + $0x278] sm:$0xff]
        %v339 = vld [vmem:[%s220 + $0x280] sm:$0xff]
        %v340 = vld [vmem:[%s220 + $0x288] sm:$0xff]
        %v341 = vld [vmem:[%s220 + $0x290] sm:$0xff]
        %v342 = vld [vmem:[%s220 + $0x298] sm:$0xff]
        %v343 = vld [vmem:[%s220 + $0x2a0] sm:$0xff]
        %v344 = vld [vmem:[%s220 + $0x2a8] sm:$0xff]
        %v345 = vld [vmem:[%s220 + $0x2b0] sm:$0xff]
        %v346 = vld [vmem:[%s220 + $0x2b8] sm:$0xff]
        %v347 = vld [vmem:[%s220 + $0x2c0] sm:$0xff]
        %v348 = vld [vmem:[%s220 + $0x2c8] sm:$0xff]
        %v349 = vld [vmem:[%s220 + $0x2d0] sm:$0xff]
        %v350 = vld [vmem:[%s220 + $0x2d8] sm:$0xff]
        %v351 = vld [vmem:[%s220 + $0x2e0] sm:$0xff]
        %v352 = vld [vmem:[%s220 + $0x2e8] sm:$0xff]
        %v353 = vld [vmem:[%s220 + $0x2f0] sm:$0xff]
        %v354 = vld [vmem:[%s220 + $0x2f8] sm:$0xff]
        %v355 = vld [vmem:[%s220 + $0x300] sm:$0xff]
        %v356 = vld [vmem:[%s220 + $0x308] sm:$0xff]
        %v357 = vld [vmem:[%s220 + $0x310] sm:$0xff]
        %v358 = vld [vmem:[%s220 + $0x318] sm:$0xff]
        %v359 = vld [vmem:[%s220 + $0x320] sm:$0xff]
        %v360 = vld [vmem:[%s220 + $0x328] sm:$0xff]
        %v361 = vld [vmem:[%s220 + $0x330] sm:$0xff]
        %v362 = vld [vmem:[%s220 + $0x338] sm:$0xff]
        %v363 = vld [vmem:[%s220 + $0x340] sm:$0xff]
        %v364 = vld [vmem:[%s220 + $0x348] sm:$0xff]
        %v365 = vld [vmem:[%s220 + $0x350] sm:$0xff]
        %v366 = vld [vmem:[%s220 + $0x358] sm:$0xff]
        %v367 = vld [vmem:[%s220 + $0x360] sm:$0xff]
        %v368 = vld [vmem:[%s220 + $0x368] sm:$0xff]
        %v369 = vld [vmem:[%s220 + $0x370] sm:$0xff]
        %v370 = vld [vmem:[%s220 + $0x378] sm:$0xff]
        %v371 = vld [vmem:[%s220 + $0x380] sm:$0xff]
        %v372 = vld [vmem:[%s220 + $0x388] sm:$0xff]
        %v373 = vld [vmem:[%s220 + $0x390] sm:$0xff]
        %v374 = vld [vmem:[%s220 + $0x398] sm:$0xff]
        %v375 = vld [vmem:[%s220 + $0x3a0] sm:$0xff]
        %v376 = vld [vmem:[%s220 + $0x3a8] sm:$0xff]
        %v377 = vld [vmem:[%s220 + $0x3b0] sm:$0xff]
        %v378 = vld [vmem:[%s220 + $0x3b8] sm:$0xff]
        %v379 = vld [vmem:[%s220 + $0x3c0] sm:$0xff]
        %v380 = vld [vmem:[%s220 + $0x3c8] sm:$0xff]
        %v381 = vld [vmem:[%s220 + $0x3d0] sm:$0xff]
        %v382 = vld [vmem:[%s220 + $0x3d8] sm:$0xff]
        %v383 = vld [vmem:[%s220 + $0x3e0] sm:$0xff]
        %v384 = vld [vmem:[%s220 + $0x3e8] sm:$0xff]
        %v385 = vld [vmem:[%s220 + $0x3f0] sm:$0xff]
        %v386 = vld [vmem:[%s220 + $0x3f8] sm:$0xff]
        %v387 = vld [vmem:[#allocation5] sm:$0xff]
        %v388 = vld [vmem:[#allocation5 + $0x8] sm:$0xff]
        %v389 = vld [vmem:[#allocation5 + $0x10] sm:$0xff]
        %v390 = vld [vmem:[#allocation5 + $0x18] sm:$0xff]
        %v391 = vld [vmem:[#allocation5 + $0x20] sm:$0xff]
        %v392 = vld [vmem:[#allocation5 + $0x28] sm:$0xff]
        %v393 = vld [vmem:[#allocation5 + $0x30] sm:$0xff]
        %v394 = vld [vmem:[#allocation5 + $0x38] sm:$0xff]
        %v395 = vld [vmem:[#allocation5 + $0x40] sm:$0xff]
        %v396 = vld [vmem:[#allocation5 + $0x48] sm:$0xff]
        %v397 = vld [vmem:[#allocation5 + $0x50] sm:$0xff]
        %v398 = vld [vmem:[#allocation5 + $0x58] sm:$0xff]
        %v399 = vld [vmem:[#allocation5 + $0x60] sm:$0xff]
        %v400 = vld [vmem:[#allocation5 + $0x68] sm:$0xff]
        %v401 = vld [vmem:[#allocation5 + $0x70] sm:$0xff]
        %v402 = vld [vmem:[#allocation5 + $0x78] sm:$0xff]
        %v403 = vld [vmem:[#allocation5 + $0x80] sm:$0xff]
        %v404 = vld [vmem:[#allocation5 + $0x88] sm:$0xff]
        %v405 = vld [vmem:[#allocation5 + $0x90] sm:$0xff]
        %v406 = vld [vmem:[#allocation5 + $0x98] sm:$0xff]
        %v407 = vld [vmem:[#allocation5 + $0xa0] sm:$0xff]
        %v408 = vld [vmem:[#allocation5 + $0xa8] sm:$0xff]
        %v409 = vld [vmem:[#allocation5 + $0xb0] sm:$0xff]
        %v410 = vld [vmem:[#allocation5 + $0xb8] sm:$0xff]
        %vm411 = vcmask 523264
        %v413 = vsel %vm411, %v260, 0
        %v416 = vsel %vm411, %v262, 0
        %v419 = vsel %vm411, %v264, 0
        %v422 = vsel %vm411, %v266, 0
        %v425 = vsel %vm411, %v268, 0
        %v428 = vsel %vm411, %v270, 0
        %v431 = vsel %vm411, %v272, 0
        %v434 = vsel %vm411, %v274, 0
        %v437 = vsel %vm411, %v276, 0
        %v440 = vsel %vm411, %v278, 0
        %v443 = vsel %vm411, %v280, 0
        %v446 = vsel %vm411, %v282, 0
        %v449 = vsel %vm411, %v284, 0
        %v452 = vsel %vm411, %v286, 0
        %v455 = vsel %vm411, %v288, 0
        %v458 = vsel %vm411, %v290, 0
        %v461 = vsel %vm411, %v292, 0
        %v464 = vsel %vm411, %v294, 0
        %v467 = vsel %vm411, %v296, 0
        %v470 = vsel %vm411, %v298, 0
        %v473 = vsel %vm411, %v300, 0
        %v476 = vsel %vm411, %v302, 0
        %v479 = vsel %vm411, %v304, 0
        %v482 = vsel %vm411, %v306, 0
        %v485 = vsel %vm411, %v308, 0
        %v488 = vsel %vm411, %v310, 0
        %v491 = vsel %vm411, %v312, 0
        %v494 = vsel %vm411, %v314, 0
        %v497 = vsel %vm411, %v316, 0
        %v500 = vsel %vm411, %v318, 0
        %v503 = vsel %vm411, %v320, 0
        %v506 = vsel %vm411, %v322, 0
        %v509 = vsel %vm411, %v324, 0
        %v512 = vsel %vm411, %v326, 0
        %v515 = vsel %vm411, %v328, 0
        %v518 = vsel %vm411, %v330, 0
        %v521 = vsel %vm411, %v332, 0
        %v524 = vsel %vm411, %v334, 0
        %v527 = vsel %vm411, %v336, 0
        %v530 = vsel %vm411, %v338, 0
        %v533 = vsel %vm411, %v340, 0
        %v536 = vsel %vm411, %v342, 0
        %v539 = vsel %vm411, %v344, 0
        %v542 = vsel %vm411, %v346, 0
        %v545 = vsel %vm411, %v348, 0
        %v548 = vsel %vm411, %v350, 0
        %v551 = vsel %vm411, %v352, 0
        %v554 = vsel %vm411, %v354, 0
        %v557 = vsel %vm411, %v356, 0
        %v560 = vsel %vm411, %v358, 0
        %v563 = vsel %vm411, %v360, 0
        %v566 = vsel %vm411, %v362, 0
        %v569 = vsel %vm411, %v364, 0
        %v572 = vsel %vm411, %v366, 0
        %v575 = vsel %vm411, %v368, 0
        %v578 = vsel %vm411, %v370, 0
        %v581 = vsel %vm411, %v372, 0
        %v584 = vsel %vm411, %v374, 0
        %v587 = vsel %vm411, %v376, 0
        %v590 = vsel %vm411, %v378, 0
        %v593 = vsel %vm411, %v380, 0
        %v596 = vsel %vm411, %v382, 0
        %v599 = vsel %vm411, %v384, 0
        %v602 = vsel %vm411, %v386, 0
        %604 = vmatprep.subr.mxu0 0.0
        %605 = vmatpush1.msra.mxu0 %v387
        %606 = vmatprep.subr.mxu0 0.0
        %607 = vmatpush1.msra.mxu0 %v388
        %608 = vmatprep.subr.mxu0 0.0
        %609 = vmatpush1.msra.mxu0 %v389
        %610 = vmatprep.subr.mxu0 0.0
        %611 = vmatpush1.msra.mxu0 %v390
        %612 = vmatprep.subr.mxu0 0.0
        %613 = vmatpush1.msra.mxu0 %v391
        %614 = vmatprep.subr.mxu0 0.0
        %615 = vmatpush1.msra.mxu0 %v392
        %616 = vmatprep.subr.mxu0 0.0
        %617 = vmatpush1.msra.mxu0 %v393
        %618 = vmatprep.subr.mxu0 0.0
        %619 = vmatpush1.msra.mxu0 %v394
        %620 = vmatprep.subr.mxu0 0.0
        %621 = vmatpush1.msra.mxu0 %v395
        %622 = vmatprep.subr.mxu0 0.0
        %623 = vmatpush1.msra.mxu0 %v396
        %624 = vmatprep.subr.mxu0 0.0
        %625 = vmatpush1.msra.mxu0 %v397
        %626 = vmatprep.subr.mxu0 0.0
        %627 = vmatpush1.msra.mxu0 %v398
        %628 = vmatprep.subr.mxu0 0.0
        %629 = vmatpush1.msra.mxu0 %v399
        %630 = vmatprep.subr.mxu0 0.0
        %631 = vmatpush1.msra.mxu0 %v400
        %632 = vmatprep.subr.mxu0 0.0
        %633 = vmatpush1.msra.mxu0 %v401
        %634 = vmatprep.subr.mxu0 0.0
        %635 = vmatpush1.msra.mxu0 %v402
        %636 = vmatprep.subr.mxu0 0.0
        %637 = vmatpush1.msra.mxu0 %v403
        %638 = vmatprep.subr.mxu0 0.0
        %639 = vmatpush1.msra.mxu0 %v404
        %640 = vmatprep.subr.mxu0 0.0
        %641 = vmatpush1.msra.mxu0 %v405
        %642 = vmatprep.subr.mxu0 0.0
        %643 = vmatpush1.msra.mxu0 %v406
        %644 = vmatprep.subr.mxu0 0.0
        %645 = vmatpush1.msra.mxu0 %v407
        %646 = vmatprep.subr.mxu0 0.0
        %647 = vmatpush1.msra.mxu0 %v408
        %648 = vmatprep.subr.mxu0 0.0
        %649 = vmatpush1.msra.mxu0 %v409
        %650 = vmatprep.subr.mxu0 0.0
        %651 = vmatpush1.msra.mxu0 %v410
        %652 = vmatprep.subr.mxu0 0.0
        %653 = vmatpush1.msra.mxu0 0.0
        %654 = vmatprep.subr.mxu0 0.0
        %655 = vmatpush1.msra.mxu0 0.0
        %656 = vmatprep.subr.mxu0 0.0
        %657 = vmatpush1.msra.mxu0 0.0
        %658 = vmatprep.subr.mxu0 0.0
        %659 = vmatpush1.msra.mxu0 0.0
        %660 = vmatprep.subr.mxu0 0.0
        %661 = vmatpush1.msra.mxu0 0.0
        %662 = vmatprep.subr.mxu0 0.0
        %663 = vmatpush1.msra.mxu0 0.0
        %664 = vmatprep.subr.mxu0 0.0
        %665 = vmatpush1.msra.mxu0 0.0
        %666 = vmatprep.subr.mxu0 0.0
        %667 = vmatpush1.msra.mxu0 0.0
        %668 = vmatprep.mubr.f32.mxu0 %v413
        %669 = vmatmul.mubr.f32.gmra.mrb[0].mxu0 %v259
        %v670 = vpop.f32.mrb[0].mxu0
        %v671 = vadd.f32 0.0, %v670
        %v672 = vpop.f32.mrb[0].mxu0
        %673 = vmatprep.mubr.f32.mxu0 %v416
        %674 = vmatmul.mubr.f32.gmra.mrb[0].mxu0 %v261
        %v675 = vpop.f32.mrb[0].mxu0
        %v676 = vadd.f32 0.0, %v675
        %v677 = vpop.f32.mrb[0].mxu0
        %678 = vmatprep.mubr.f32.mxu0 %v419
        %679 = vmatmul.mubr.f32.gmra.mrb[0].mxu0 %v263
        %v680 = vpop.f32.mrb[0].mxu0
        %v681 = vadd.f32 0.0, %v680
        %v682 = vpop.f32.mrb[0].mxu0
        %683 = vmatprep.mubr.f32.mxu0 %v422
        %684 = vmatmul.mubr.f32.gmra.mrb[0].mxu0 %v265
        %v685 = vpop.f32.mrb[0].mxu0
        %v686 = vadd.f32 0.0, %v685
        %v687 = vpop.f32.mrb[0].mxu0
        %688 = vmatprep.mubr.f32.mxu0 %v425
        %689 = vmatmul.mubr.f32.gmra.mrb[0].mxu0 %v267
        %v690 = vpop.f32.mrb[0].mxu0
        %v691 = vadd.f32 0.0, %v690
        %v692 = vpop.f32.mrb[0].mxu0
        %693 = vmatprep.mubr.f32.mxu0 %v428
        %694 = vmatmul.mubr.f32.gmra.mrb[0].mxu0 %v269
        %v695 = vpop.f32.mrb[0].mxu0
        %v696 = vadd.f32 0.0, %v695
        %v697 = vpop.f32.mrb[0].mxu0
        %698 = vmatprep.mubr.f32.mxu0 %v431
        %699 = vmatmul.mubr.f32.gmra.mrb[0].mxu0 %v271
        %v700 = vpop.f32.mrb[0].mxu0
        %v701 = vadd.f32 0.0, %v700
        %v702 = vpop.f32.mrb[0].mxu0
        %703 = vmatprep.mubr.f32.mxu0 %v434
        %704 = vmatmul.mubr.f32.gmra.mrb[0].mxu0 %v273
        %v705 = vpop.f32.mrb[0].mxu0
        %v706 = vadd.f32 0.0, %v705
        %v707 = vpop.f32.mrb[0].mxu0
        %708 = vmatprep.mubr.f32.mxu0 %v437
        %709 = vmatmul.mubr.f32.gmra.mrb[0].mxu0 %v275
        %v710 = vpop.f32.mrb[0].mxu0
        %v711 = vadd.f32 0.0, %v710
        %v712 = vpop.f32.mrb[0].mxu0
        %713 = vmatprep.mubr.f32.mxu0 %v440
        %714 = vmatmul.mubr.f32.gmra.mrb[0].mxu0 %v277
        %v715 = vpop.f32.mrb[0].mxu0
        %v716 = vadd.f32 0.0, %v715
        %v717 = vpop.f32.mrb[0].mxu0
        %718 = vmatprep.mubr.f32.mxu0 %v443
        %719 = vmatmul.mubr.f32.gmra.mrb[0].mxu0 %v279
        %v720 = vpop.f32.mrb[0].mxu0
        %v721 = vadd.f32 0.0, %v720
        %v722 = vpop.f32.mrb[0].mxu0
        %723 = vmatprep.mubr.f32.mxu0 %v446
        %724 = vmatmul.mubr.f32.gmra.mrb[0].mxu0 %v281
        %v725 = vpop.f32.mrb[0].mxu0
        %v726 = vadd.f32 0.0, %v725
        %v727 = vpop.f32.mrb[0].mxu0
        %728 = vmatprep.mubr.f32.mxu0 %v449
        %729 = vmatmul.mubr.f32.gmra.mrb[0].mxu0 %v283
        %v730 = vpop.f32.mrb[0].mxu0
        %v731 = vadd.f32 0.0, %v730
        %v732 = vpop.f32.mrb[0].mxu0
        %733 = vmatprep.mubr.f32.mxu0 %v452
        %734 = vmatmul.mubr.f32.gmra.mrb[0].mxu0 %v285
        %v735 = vpop.f32.mrb[0].mxu0
        %v736 = vadd.f32 0.0, %v735
        %v737 = vpop.f32.mrb[0].mxu0
        %738 = vmatprep.mubr.f32.mxu0 %v455
        %739 = vmatmul.mubr.f32.gmra.mrb[0].mxu0 %v287
        %v740 = vpop.f32.mrb[0].mxu0
        %v741 = vadd.f32 0.0, %v740
        %v742 = vpop.f32.mrb[0].mxu0
        %743 = vmatprep.mubr.f32.mxu0 %v458
        %744 = vmatmul.mubr.f32.gmra.mrb[0].mxu0 %v289
        %v745 = vpop.f32.mrb[0].mxu0
        %v746 = vadd.f32 0.0, %v745
        %v747 = vpop.f32.mrb[0].mxu0
        %748 = vmatprep.mubr.f32.mxu0 %v461
        %749 = vmatmul.mubr.f32.gmra.mrb[0].mxu0 %v291
        %v750 = vpop.f32.mrb[0].mxu0
        %v751 = vadd.f32 0.0, %v750
        %v752 = vpop.f32.mrb[0].mxu0
        %753 = vmatprep.mubr.f32.mxu0 %v464
        %754 = vmatmul.mubr.f32.gmra.mrb[0].mxu0 %v293
        %v755 = vpop.f32.mrb[0].mxu0
        %v756 = vadd.f32 0.0, %v755
        %v757 = vpop.f32.mrb[0].mxu0
        %758 = vmatprep.mubr.f32.mxu0 %v467
        %759 = vmatmul.mubr.f32.gmra.mrb[0].mxu0 %v295
        %v760 = vpop.f32.mrb[0].mxu0
        %v761 = vadd.f32 0.0, %v760
        %v762 = vpop.f32.mrb[0].mxu0
        %763 = vmatprep.mubr.f32.mxu0 %v470
        %764 = vmatmul.mubr.f32.gmra.mrb[0].mxu0 %v297
        %v765 = vpop.f32.mrb[0].mxu0
        %v766 = vadd.f32 0.0, %v765
        %v767 = vpop.f32.mrb[0].mxu0
        %768 = vmatprep.mubr.f32.mxu0 %v473
        %769 = vmatmul.mubr.f32.gmra.mrb[0].mxu0 %v299
        %v770 = vpop.f32.mrb[0].mxu0
        %v771 = vadd.f32 0.0, %v770
        %v772 = vpop.f32.mrb[0].mxu0
        %773 = vmatprep.mubr.f32.mxu0 %v476
        %774 = vmatmul.mubr.f32.gmra.mrb[0].mxu0 %v301
        %v775 = vpop.f32.mrb[0].mxu0
        %v776 = vadd.f32 0.0, %v775
        %v777 = vpop.f32.mrb[0].mxu0
        %778 = vmatprep.mubr.f32.mxu0 %v479
        %779 = vmatmul.mubr.f32.gmra.mrb[0].mxu0 %v303
        %v780 = vpop.f32.mrb[0].mxu0
        %v781 = vadd.f32 0.0, %v780
        %v782 = vpop.f32.mrb[0].mxu0
        %783 = vmatprep.mubr.f32.mxu0 %v482
        %784 = vmatmul.mubr.f32.gmra.mrb[0].mxu0 %v305
        %v785 = vpop.f32.mrb[0].mxu0
        %v786 = vadd.f32 0.0, %v785
        %v787 = vpop.f32.mrb[0].mxu0
        %788 = vmatprep.mubr.f32.mxu0 %v485
        %789 = vmatmul.mubr.f32.gmra.mrb[0].mxu0 %v307
        %v790 = vpop.f32.mrb[0].mxu0
        %v791 = vadd.f32 0.0, %v790
        %v792 = vpop.f32.mrb[0].mxu0
        %793 = vmatprep.mubr.f32.mxu0 %v488
        %794 = vmatmul.mubr.f32.gmra.mrb[0].mxu0 %v309
        %v795 = vpop.f32.mrb[0].mxu0
        %v796 = vadd.f32 0.0, %v795
        %v797 = vpop.f32.mrb[0].mxu0
        %798 = vmatprep.mubr.f32.mxu0 %v491
        %799 = vmatmul.mubr.f32.gmra.mrb[0].mxu0 %v311
        %v800 = vpop.f32.mrb[0].mxu0
        %v801 = vadd.f32 0.0, %v800
        %v802 = vpop.f32.mrb[0].mxu0
        %803 = vmatprep.mubr.f32.mxu0 %v494
        %804 = vmatmul.mubr.f32.gmra.mrb[0].mxu0 %v313
        %v805 = vpop.f32.mrb[0].mxu0
        %v806 = vadd.f32 0.0, %v805
        %v807 = vpop.f32.mrb[0].mxu0
        %808 = vmatprep.mubr.f32.mxu0 %v497
        %809 = vmatmul.mubr.f32.gmra.mrb[0].mxu0 %v315
        %v810 = vpop.f32.mrb[0].mxu0
        %v811 = vadd.f32 0.0, %v810
        %v812 = vpop.f32.mrb[0].mxu0
        %813 = vmatprep.mubr.f32.mxu0 %v500
        %814 = vmatmul.mubr.f32.gmra.mrb[0].mxu0 %v317
        %v815 = vpop.f32.mrb[0].mxu0
        %v816 = vadd.f32 0.0, %v815
        %v817 = vpop.f32.mrb[0].mxu0
        %818 = vmatprep.mubr.f32.mxu0 %v503
        %819 = vmatmul.mubr.f32.gmra.mrb[0].mxu0 %v319
        %v820 = vpop.f32.mrb[0].mxu0
        %v821 = vadd.f32 0.0, %v820
        %v822 = vpop.f32.mrb[0].mxu0
        %823 = vmatprep.mubr.f32.mxu0 %v506
        %824 = vmatmul.mubr.f32.gmra.mrb[0].mxu0 %v321
        %v825 = vpop.f32.mrb[0].mxu0
        %v826 = vadd.f32 0.0, %v825
        %v827 = vpop.f32.mrb[0].mxu0
        %828 = vmatprep.mubr.f32.mxu0 %v509
        %829 = vmatmul.mubr.f32.gmra.mrb[0].mxu0 %v323
        %v830 = vpop.f32.mrb[0].mxu0
        %v831 = vadd.f32 0.0, %v830
        %v832 = vpop.f32.mrb[0].mxu0
        %833 = vmatprep.mubr.f32.mxu0 %v512
        %834 = vmatmul.mubr.f32.gmra.mrb[0].mxu0 %v325
        %v835 = vpop.f32.mrb[0].mxu0
        %v836 = vadd.f32 0.0, %v835
        %v837 = vpop.f32.mrb[0].mxu0
        %838 = vmatprep.mubr.f32.mxu0 %v515
        %839 = vmatmul.mubr.f32.gmra.mrb[0].mxu0 %v327
        %v840 = vpop.f32.mrb[0].mxu0
        %v841 = vadd.f32 0.0, %v840
        %v842 = vpop.f32.mrb[0].mxu0
        %843 = vmatprep.mubr.f32.mxu0 %v518
        %844 = vmatmul.mubr.f32.gmra.mrb[0].mxu0 %v329
        %v845 = vpop.f32.mrb[0].mxu0
        %v846 = vadd.f32 0.0, %v845
        %v847 = vpop.f32.mrb[0].mxu0
        %848 = vmatprep.mubr.f32.mxu0 %v521
        %849 = vmatmul.mubr.f32.gmra.mrb[0].mxu0 %v331
        %v850 = vpop.f32.mrb[0].mxu0
        %v851 = vadd.f32 0.0, %v850
        %v852 = vpop.f32.mrb[0].mxu0
        %853 = vmatprep.mubr.f32.mxu0 %v524
        %854 = vmatmul.mubr.f32.gmra.mrb[0].mxu0 %v333
        %v855 = vpop.f32.mrb[0].mxu0
        %v856 = vadd.f32 0.0, %v855
        %v857 = vpop.f32.mrb[0].mxu0
        %858 = vmatprep.mubr.f32.mxu0 %v527
        %859 = vmatmul.mubr.f32.gmra.mrb[0].mxu0 %v335
        %v860 = vpop.f32.mrb[0].mxu0
        %v861 = vadd.f32 0.0, %v860
        %v862 = vpop.f32.mrb[0].mxu0
        %863 = vmatprep.mubr.f32.mxu0 %v530
        %864 = vmatmul.mubr.f32.gmra.mrb[0].mxu0 %v337
        %v865 = vpop.f32.mrb[0].mxu0
        %v866 = vadd.f32 0.0, %v865
        %v867 = vpop.f32.mrb[0].mxu0
        %868 = vmatprep.mubr.f32.mxu0 %v533
        %869 = vmatmul.mubr.f32.gmra.mrb[0].mxu0 %v339
        %v870 = vpop.f32.mrb[0].mxu0
        %v871 = vadd.f32 0.0, %v870
        %v872 = vpop.f32.mrb[0].mxu0
        %873 = vmatprep.mubr.f32.mxu0 %v536
        %874 = vmatmul.mubr.f32.gmra.mrb[0].mxu0 %v341
        %v875 = vpop.f32.mrb[0].mxu0
        %v876 = vadd.f32 0.0, %v875
        %v877 = vpop.f32.mrb[0].mxu0
        %878 = vmatprep.mubr.f32.mxu0 %v539
        %879 = vmatmul.mubr.f32.gmra.mrb[0].mxu0 %v343
        %v880 = vpop.f32.mrb[0].mxu0
        %v881 = vadd.f32 0.0, %v880
        %v882 = vpop.f32.mrb[0].mxu0
        %883 = vmatprep.mubr.f32.mxu0 %v542
        %884 = vmatmul.mubr.f32.gmra.mrb[0].mxu0 %v345
        %v885 = vpop.f32.mrb[0].mxu0
        %v886 = vadd.f32 0.0, %v885
        %v887 = vpop.f32.mrb[0].mxu0
        %888 = vmatprep.mubr.f32.mxu0 %v545
        %889 = vmatmul.mubr.f32.gmra.mrb[0].mxu0 %v347
        %v890 = vpop.f32.mrb[0].mxu0
        %v891 = vadd.f32 0.0, %v890
        %v892 = vpop.f32.mrb[0].mxu0
        %893 = vmatprep.mubr.f32.mxu0 %v548
        %894 = vmatmul.mubr.f32.gmra.mrb[0].mxu0 %v349
        %v895 = vpop.f32.mrb[0].mxu0
        %v896 = vadd.f32 0.0, %v895
        %v897 = vpop.f32.mrb[0].mxu0
        %898 = vmatprep.mubr.f32.mxu0 %v551
        %899 = vmatmul.mubr.f32.gmra.mrb[0].mxu0 %v351
        %v900 = vpop.f32.mrb[0].mxu0
        %v901 = vadd.f32 0.0, %v900
        %v902 = vpop.f32.mrb[0].mxu0
        %903 = vmatprep.mubr.f32.mxu0 %v554
        %904 = vmatmul.mubr.f32.gmra.mrb[0].mxu0 %v353
        %v905 = vpop.f32.mrb[0].mxu0
        %v906 = vadd.f32 0.0, %v905
        %v907 = vpop.f32.mrb[0].mxu0
        %908 = vmatprep.mubr.f32.mxu0 %v557
        %909 = vmatmul.mubr.f32.gmra.mrb[0].mxu0 %v355
        %v910 = vpop.f32.mrb[0].mxu0
        %v911 = vadd.f32 0.0, %v910
        %v912 = vpop.f32.mrb[0].mxu0
        %913 = vmatprep.mubr.f32.mxu0 %v560
        %914 = vmatmul.mubr.f32.gmra.mrb[0].mxu0 %v357
        %v915 = vpop.f32.mrb[0].mxu0
        %v916 = vadd.f32 0.0, %v915
        %v917 = vpop.f32.mrb[0].mxu0
        %918 = vmatprep.mubr.f32.mxu0 %v563
        %919 = vmatmul.mubr.f32.gmra.mrb[0].mxu0 %v359
        %v920 = vpop.f32.mrb[0].mxu0
        %v921 = vadd.f32 0.0, %v920
        %v922 = vpop.f32.mrb[0].mxu0
        %923 = vmatprep.mubr.f32.mxu0 %v566
        %924 = vmatmul.mubr.f32.gmra.mrb[0].mxu0 %v361
        %v925 = vpop.f32.mrb[0].mxu0
        %v926 = vadd.f32 0.0, %v925
        %v927 = vpop.f32.mrb[0].mxu0
        %928 = vmatprep.mubr.f32.mxu0 %v569
        %929 = vmatmul.mubr.f32.gmra.mrb[0].mxu0 %v363
        %v930 = vpop.f32.mrb[0].mxu0
        %v931 = vadd.f32 0.0, %v930
        %v932 = vpop.f32.mrb[0].mxu0
        %933 = vmatprep.mubr.f32.mxu0 %v572
        %934 = vmatmul.mubr.f32.gmra.mrb[0].mxu0 %v365
        %v935 = vpop.f32.mrb[0].mxu0
        %v936 = vadd.f32 0.0, %v935
        %v937 = vpop.f32.mrb[0].mxu0
        %938 = vmatprep.mubr.f32.mxu0 %v575
        %939 = vmatmul.mubr.f32.gmra.mrb[0].mxu0 %v367
        %v940 = vpop.f32.mrb[0].mxu0
        %v941 = vadd.f32 0.0, %v940
        %v942 = vpop.f32.mrb[0].mxu0
        %943 = vmatprep.mubr.f32.mxu0 %v578
        %944 = vmatmul.mubr.f32.gmra.mrb[0].mxu0 %v369
        %v945 = vpop.f32.mrb[0].mxu0
        %v946 = vadd.f32 0.0, %v945
        %v947 = vpop.f32.mrb[0].mxu0
        %948 = vmatprep.mubr.f32.mxu0 %v581
        %949 = vmatmul.mubr.f32.gmra.mrb[0].mxu0 %v371
        %v950 = vpop.f32.mrb[0].mxu0
        %v951 = vadd.f32 0.0, %v950
        %v952 = vpop.f32.mrb[0].mxu0
        %953 = vmatprep.mubr.f32.mxu0 %v584
        %954 = vmatmul.mubr.f32.gmra.mrb[0].mxu0 %v373
        %v955 = vpop.f32.mrb[0].mxu0
        %v956 = vadd.f32 0.0, %v955
        %v957 = vpop.f32.mrb[0].mxu0
        %958 = vmatprep.mubr.f32.mxu0 %v587
        %959 = vmatmul.mubr.f32.gmra.mrb[0].mxu0 %v375
        %v960 = vpop.f32.mrb[0].mxu0
        %v961 = vadd.f32 0.0, %v960
        %v962 = vpop.f32.mrb[0].mxu0
        %963 = vmatprep.mubr.f32.mxu0 %v590
        %964 = vmatmul.mubr.f32.gmra.mrb[0].mxu0 %v377
        %v965 = vpop.f32.mrb[0].mxu0
        %v966 = vadd.f32 0.0, %v965
        %v967 = vpop.f32.mrb[0].mxu0
        %968 = vmatprep.mubr.f32.mxu0 %v593
        %969 = vmatmul.mubr.f32.gmra.mrb[0].mxu0 %v379
        %v970 = vpop.f32.mrb[0].mxu0
        %v971 = vadd.f32 0.0, %v970
        %v972 = vpop.f32.mrb[0].mxu0
        %973 = vmatprep.mubr.f32.mxu0 %v596
        %974 = vmatmul.mubr.f32.gmra.mrb[0].mxu0 %v381
        %v975 = vpop.f32.mrb[0].mxu0
        %v976 = vadd.f32 0.0, %v975
        %v977 = vpop.f32.mrb[0].mxu0
        %978 = vmatprep.mubr.f32.mxu0 %v599
        %979 = vmatmul.mubr.f32.gmra.mrb[0].mxu0 %v383
        %v980 = vpop.f32.mrb[0].mxu0
        %v981 = vadd.f32 0.0, %v980
        %v982 = vpop.f32.mrb[0].mxu0
        %983 = vmatprep.mubr.f32.mxu0 %v602
        %984 = vmatmul.mubr.f32.gmra.mrb[0].mxu0 %v385
        %v985 = vpop.f32.mrb[0].mxu0
        %v986 = vadd.f32 0.0, %v985
        %v987 = vpop.f32.mrb[0].mxu0
        %988 = vdwg.mxu0
        %989 = vadd.xlane.f32.xlu0 %v671
        %v990 = vpop.xlane.xlu0 %989
        %991 = vadd.xlane.f32.xlu0 %v676
        %v992 = vpop.xlane.xlu0 %991
        %993 = vadd.xlane.f32.xlu0 %v681
        %v994 = vpop.xlane.xlu0 %993
        %995 = vadd.xlane.f32.xlu0 %v686
        %v996 = vpop.xlane.xlu0 %995
        %997 = vadd.xlane.f32.xlu0 %v691
        %v998 = vpop.xlane.xlu0 %997
        %999 = vadd.xlane.f32.xlu0 %v696
        %v1000 = vpop.xlane.xlu0 %999
        %1001 = vadd.xlane.f32.xlu0 %v701
        %v1002 = vpop.xlane.xlu0 %1001
        %1003 = vadd.xlane.f32.xlu0 %v706
        %v1004 = vpop.xlane.xlu0 %1003
        %1005 = vadd.xlane.f32.xlu0 %v711
        %v1006 = vpop.xlane.xlu0 %1005
        %1007 = vadd.xlane.f32.xlu0 %v716
        %v1008 = vpop.xlane.xlu0 %1007
        %1009 = vadd.xlane.f32.xlu0 %v721
        %v1010 = vpop.xlane.xlu0 %1009
        %1011 = vadd.xlane.f32.xlu0 %v726
        %v1012 = vpop.xlane.xlu0 %1011
        %1013 = vadd.xlane.f32.xlu0 %v731
        %v1014 = vpop.xlane.xlu0 %1013
        %1015 = vadd.xlane.f32.xlu0 %v736
        %v1016 = vpop.xlane.xlu0 %1015
        %1017 = vadd.xlane.f32.xlu0 %v741
        %v1018 = vpop.xlane.xlu0 %1017
        %1019 = vadd.xlane.f32.xlu0 %v746
        %v1020 = vpop.xlane.xlu0 %1019
        %1021 = vadd.xlane.f32.xlu0 %v751
        %v1022 = vpop.xlane.xlu0 %1021
        %1023 = vadd.xlane.f32.xlu0 %v756
        %v1024 = vpop.xlane.xlu0 %1023
        %1025 = vadd.xlane.f32.xlu0 %v761
        %v1026 = vpop.xlane.xlu0 %1025
        %1027 = vadd.xlane.f32.xlu0 %v766
        %v1028 = vpop.xlane.xlu0 %1027
        %1029 = vadd.xlane.f32.xlu0 %v771
        %v1030 = vpop.xlane.xlu0 %1029
        %1031 = vadd.xlane.f32.xlu0 %v776
        %v1032 = vpop.xlane.xlu0 %1031
        %1033 = vadd.xlane.f32.xlu0 %v781
        %v1034 = vpop.xlane.xlu0 %1033
        %1035 = vadd.xlane.f32.xlu0 %v786
        %v1036 = vpop.xlane.xlu0 %1035
        %1037 = vadd.xlane.f32.xlu0 %v791
        %v1038 = vpop.xlane.xlu0 %1037
        %1039 = vadd.xlane.f32.xlu0 %v796
        %v1040 = vpop.xlane.xlu0 %1039
        %1041 = vadd.xlane.f32.xlu0 %v801
        %v1042 = vpop.xlane.xlu0 %1041
        %1043 = vadd.xlane.f32.xlu0 %v806
        %v1044 = vpop.xlane.xlu0 %1043
        %1045 = vadd.xlane.f32.xlu0 %v811
        %v1046 = vpop.xlane.xlu0 %1045
        %1047 = vadd.xlane.f32.xlu0 %v816
        %v1048 = vpop.xlane.xlu0 %1047
        %1049 = vadd.xlane.f32.xlu0 %v821
        %v1050 = vpop.xlane.xlu0 %1049
        %1051 = vadd.xlane.f32.xlu0 %v826
        %v1052 = vpop.xlane.xlu0 %1051
        %1053 = vadd.xlane.f32.xlu0 %v831
        %v1054 = vpop.xlane.xlu0 %1053
        %1055 = vadd.xlane.f32.xlu0 %v836
        %v1056 = vpop.xlane.xlu0 %1055
        %1057 = vadd.xlane.f32.xlu0 %v841
        %v1058 = vpop.xlane.xlu0 %1057
        %1059 = vadd.xlane.f32.xlu0 %v846
        %v1060 = vpop.xlane.xlu0 %1059
        %1061 = vadd.xlane.f32.xlu0 %v851
        %v1062 = vpop.xlane.xlu0 %1061
        %1063 = vadd.xlane.f32.xlu0 %v856
        %v1064 = vpop.xlane.xlu0 %1063
        %1065 = vadd.xlane.f32.xlu0 %v861
        %v1066 = vpop.xlane.xlu0 %1065
        %1067 = vadd.xlane.f32.xlu0 %v866
        %v1068 = vpop.xlane.xlu0 %1067
        %1069 = vadd.xlane.f32.xlu0 %v871
        %v1070 = vpop.xlane.xlu0 %1069
        %1071 = vadd.xlane.f32.xlu0 %v876
        %v1072 = vpop.xlane.xlu0 %1071
        %1073 = vadd.xlane.f32.xlu0 %v881
        %v1074 = vpop.xlane.xlu0 %1073
        %1075 = vadd.xlane.f32.xlu0 %v886
        %v1076 = vpop.xlane.xlu0 %1075
        %1077 = vadd.xlane.f32.xlu0 %v891
        %v1078 = vpop.xlane.xlu0 %1077
        %1079 = vadd.xlane.f32.xlu0 %v896
        %v1080 = vpop.xlane.xlu0 %1079
        %1081 = vadd.xlane.f32.xlu0 %v901
        %v1082 = vpop.xlane.xlu0 %1081
        %1083 = vadd.xlane.f32.xlu0 %v906
        %v1084 = vpop.xlane.xlu0 %1083
        %1085 = vadd.xlane.f32.xlu0 %v911
        %v1086 = vpop.xlane.xlu0 %1085
        %1087 = vadd.xlane.f32.xlu0 %v916
        %v1088 = vpop.xlane.xlu0 %1087
        %1089 = vadd.xlane.f32.xlu0 %v921
        %v1090 = vpop.xlane.xlu0 %1089
        %1091 = vadd.xlane.f32.xlu0 %v926
        %v1092 = vpop.xlane.xlu0 %1091
        %1093 = vadd.xlane.f32.xlu0 %v931
        %v1094 = vpop.xlane.xlu0 %1093
        %1095 = vadd.xlane.f32.xlu0 %v936
        %v1096 = vpop.xlane.xlu0 %1095
        %1097 = vadd.xlane.f32.xlu0 %v941
        %v1098 = vpop.xlane.xlu0 %1097
        %1099 = vadd.xlane.f32.xlu0 %v946
        %v1100 = vpop.xlane.xlu0 %1099
        %1101 = vadd.xlane.f32.xlu0 %v951
        %v1102 = vpop.xlane.xlu0 %1101
        %1103 = vadd.xlane.f32.xlu0 %v956
        %v1104 = vpop.xlane.xlu0 %1103
        %1105 = vadd.xlane.f32.xlu0 %v961
        %v1106 = vpop.xlane.xlu0 %1105
        %1107 = vadd.xlane.f32.xlu0 %v966
        %v1108 = vpop.xlane.xlu0 %1107
        %1109 = vadd.xlane.f32.xlu0 %v971
        %v1110 = vpop.xlane.xlu0 %1109
        %1111 = vadd.xlane.f32.xlu0 %v976
        %v1112 = vpop.xlane.xlu0 %1111
        %1113 = vadd.xlane.f32.xlu0 %v981
        %v1114 = vpop.xlane.xlu0 %1113
        %1115 = vadd.xlane.f32.xlu0 %v986
        %v1116 = vpop.xlane.xlu0 %1115
        %v1117 = vrcp.pop 128.0
        %v1118 = vmul.f32 %v990, %v1117
        %v1119 = vmul.f32 %v992, %v1117
        %v1120 = vmul.f32 %v994, %v1117
        %v1121 = vmul.f32 %v996, %v1117
        %v1122 = vmul.f32 %v998, %v1117
        %v1123 = vmul.f32 %v1000, %v1117
        %v1124 = vmul.f32 %v1002, %v1117
        %v1125 = vmul.f32 %v1004, %v1117
        %v1126 = vmul.f32 %v1006, %v1117
        %v1127 = vmul.f32 %v1008, %v1117
        %v1128 = vmul.f32 %v1010, %v1117
        %v1129 = vmul.f32 %v1012, %v1117
        %v1130 = vmul.f32 %v1014, %v1117
        %v1131 = vmul.f32 %v1016, %v1117
        %v1132 = vmul.f32 %v1018, %v1117
        %v1133 = vmul.f32 %v1020, %v1117
        %v1134 = vmul.f32 %v1022, %v1117
        %v1135 = vmul.f32 %v1024, %v1117
        %v1136 = vmul.f32 %v1026, %v1117
        %v1137 = vmul.f32 %v1028, %v1117
        %v1138 = vmul.f32 %v1030, %v1117
        %v1139 = vmul.f32 %v1032, %v1117
        %v1140 = vmul.f32 %v1034, %v1117
        %v1141 = vmul.f32 %v1036, %v1117
        %v1142 = vmul.f32 %v1038, %v1117
        %v1143 = vmul.f32 %v1040, %v1117
        %v1144 = vmul.f32 %v1042, %v1117
        %v1145 = vmul.f32 %v1044, %v1117
        %v1146 = vmul.f32 %v1046, %v1117
        %v1147 = vmul.f32 %v1048, %v1117
        %v1148 = vmul.f32 %v1050, %v1117
        %v1149 = vmul.f32 %v1052, %v1117
        %v1150 = vmul.f32 %v1054, %v1117
        %v1151 = vmul.f32 %v1056, %v1117
        %v1152 = vmul.f32 %v1058, %v1117
        %v1153 = vmul.f32 %v1060, %v1117
        %v1154 = vmul.f32 %v1062, %v1117
        %v1155 = vmul.f32 %v1064, %v1117
        %v1156 = vmul.f32 %v1066, %v1117
        %v1157 = vmul.f32 %v1068, %v1117
        %v1158 = vmul.f32 %v1070, %v1117
        %v1159 = vmul.f32 %v1072, %v1117
        %v1160 = vmul.f32 %v1074, %v1117
        %v1161 = vmul.f32 %v1076, %v1117
        %v1162 = vmul.f32 %v1078, %v1117
        %v1163 = vmul.f32 %v1080, %v1117
        %v1164 = vmul.f32 %v1082, %v1117
        %v1165 = vmul.f32 %v1084, %v1117
        %v1166 = vmul.f32 %v1086, %v1117
        %v1167 = vmul.f32 %v1088, %v1117
        %v1168 = vmul.f32 %v1090, %v1117
        %v1169 = vmul.f32 %v1092, %v1117
        %v1170 = vmul.f32 %v1094, %v1117
        %v1171 = vmul.f32 %v1096, %v1117
        %v1172 = vmul.f32 %v1098, %v1117
        %v1173 = vmul.f32 %v1100, %v1117
        %v1174 = vmul.f32 %v1102, %v1117
        %v1175 = vmul.f32 %v1104, %v1117
        %v1176 = vmul.f32 %v1106, %v1117
        %v1177 = vmul.f32 %v1108, %v1117
        %v1178 = vmul.f32 %v1110, %v1117
        %v1179 = vmul.f32 %v1112, %v1117
        %v1180 = vmul.f32 %v1114, %v1117
        %v1181 = vmul.f32 %v1116, %v1117
        %v1182 = vsub.f32 %v671, %v1118
        %v1183 = vsub.f32 %v676, %v1119
        %v1184 = vsub.f32 %v681, %v1120
        %v1185 = vsub.f32 %v686, %v1121
        %v1186 = vsub.f32 %v691, %v1122
        %v1187 = vsub.f32 %v696, %v1123
        %v1188 = vsub.f32 %v701, %v1124
        %v1189 = vsub.f32 %v706, %v1125
        %v1190 = vsub.f32 %v711, %v1126
        %v1191 = vsub.f32 %v716, %v1127
        %v1192 = vsub.f32 %v721, %v1128
        %v1193 = vsub.f32 %v726, %v1129
        %v1194 = vsub.f32 %v731, %v1130
        %v1195 = vsub.f32 %v736, %v1131
        %v1196 = vsub.f32 %v741, %v1132
        %v1197 = vsub.f32 %v746, %v1133
        %v1198 = vsub.f32 %v751, %v1134
        %v1199 = vsub.f32 %v756, %v1135
        %v1200 = vsub.f32 %v761, %v1136
        %v1201 = vsub.f32 %v766, %v1137
        %v1202 = vsub.f32 %v771, %v1138
        %v1203 = vsub.f32 %v776, %v1139
        %v1204 = vsub.f32 %v781, %v1140
        %v1205 = vsub.f32 %v786, %v1141
        %v1206 = vsub.f32 %v791, %v1142
        %v1207 = vsub.f32 %v796, %v1143
        %v1208 = vsub.f32 %v801, %v1144
        %v1209 = vsub.f32 %v806, %v1145
        %v1210 = vsub.f32 %v811, %v1146
        %v1211 = vsub.f32 %v816, %v1147
        %v1212 = vsub.f32 %v821, %v1148
        %v1213 = vsub.f32 %v826, %v1149
        %v1214 = vsub.f32 %v831, %v1150
        %v1215 = vsub.f32 %v836, %v1151
        %v1216 = vsub.f32 %v841, %v1152
        %v1217 = vsub.f32 %v846, %v1153
        %v1218 = vsub.f32 %v851, %v1154
        %v1219 = vsub.f32 %v856, %v1155
        %v1220 = vsub.f32 %v861, %v1156
        %v1221 = vsub.f32 %v866, %v1157
        %v1222 = vsub.f32 %v871, %v1158
        %v1223 = vsub.f32 %v876, %v1159
        %v1224 = vsub.f32 %v881, %v1160
        %v1225 = vsub.f32 %v886, %v1161
        %v1226 = vsub.f32 %v891, %v1162
        %v1227 = vsub.f32 %v896, %v1163
        %v1228 = vsub.f32 %v901, %v1164
        %v1229 = vsub.f32 %v906, %v1165
        %v1230 = vsub.f32 %v911, %v1166
        %v1231 = vsub.f32 %v916, %v1167
        %v1232 = vsub.f32 %v921, %v1168
        %v1233 = vsub.f32 %v926, %v1169
        %v1234 = vsub.f32 %v931, %v1170
        %v1235 = vsub.f32 %v936, %v1171
        %v1236 = vsub.f32 %v941, %v1172
        %v1237 = vsub.f32 %v946, %v1173
        %v1238 = vsub.f32 %v951, %v1174
        %v1239 = vsub.f32 %v956, %v1175
        %v1240 = vsub.f32 %v961, %v1176
        %v1241 = vsub.f32 %v966, %v1177
        %v1242 = vsub.f32 %v971, %v1178
        %v1243 = vsub.f32 %v976, %v1179
        %v1244 = vsub.f32 %v981, %v1180
        %v1245 = vsub.f32 %v986, %v1181
        %v1246 = vmul.f32 %v1182, %v1182
        %v1247 = vmul.f32 %v1183, %v1183
        %v1248 = vmul.f32 %v1184, %v1184
        %v1249 = vmul.f32 %v1185, %v1185
        %v1250 = vmul.f32 %v1186, %v1186
        %v1251 = vmul.f32 %v1187, %v1187
        %v1252 = vmul.f32 %v1188, %v1188
        %v1253 = vmul.f32 %v1189, %v1189
        %v1254 = vmul.f32 %v1190, %v1190
        %v1255 = vmul.f32 %v1191, %v1191
        %v1256 = vmul.f32 %v1192, %v1192
        %v1257 = vmul.f32 %v1193, %v1193
        %v1258 = vmul.f32 %v1194, %v1194
        %v1259 = vmul.f32 %v1195, %v1195
        %v1260 = vmul.f32 %v1196, %v1196
        %v1261 = vmul.f32 %v1197, %v1197
        %v1262 = vmul.f32 %v1198, %v1198
        %v1263 = vmul.f32 %v1199, %v1199
        %v1264 = vmul.f32 %v1200, %v1200
        %v1265 = vmul.f32 %v1201, %v1201
        %v1266 = vmul.f32 %v1202, %v1202
        %v1267 = vmul.f32 %v1203, %v1203
        %v1268 = vmul.f32 %v1204, %v1204
        %v1269 = vmul.f32 %v1205, %v1205
        %v1270 = vmul.f32 %v1206, %v1206
        %v1271 = vmul.f32 %v1207, %v1207
        %v1272 = vmul.f32 %v1208, %v1208
        %v1273 = vmul.f32 %v1209, %v1209
        %v1274 = vmul.f32 %v1210, %v1210
        %v1275 = vmul.f32 %v1211, %v1211
        %v1276 = vmul.f32 %v1212, %v1212
        %v1277 = vmul.f32 %v1213, %v1213
        %v1278 = vmul.f32 %v1214, %v1214
        %v1279 = vmul.f32 %v1215, %v1215
        %v1280 = vmul.f32 %v1216, %v1216
        %v1281 = vmul.f32 %v1217, %v1217
        %v1282 = vmul.f32 %v1218, %v1218
        %v1283 = vmul.f32 %v1219, %v1219
        %v1284 = vmul.f32 %v1220, %v1220
        %v1285 = vmul.f32 %v1221, %v1221
        %v1286 = vmul.f32 %v1222, %v1222
        %v1287 = vmul.f32 %v1223, %v1223
        %v1288 = vmul.f32 %v1224, %v1224
        %v1289 = vmul.f32 %v1225, %v1225
        %v1290 = vmul.f32 %v1226, %v1226
        %v1291 = vmul.f32 %v1227, %v1227
        %v1292 = vmul.f32 %v1228, %v1228
        %v1293 = vmul.f32 %v1229, %v1229
        %v1294 = vmul.f32 %v1230, %v1230
        %v1295 = vmul.f32 %v1231, %v1231
        %v1296 = vmul.f32 %v1232, %v1232
        %v1297 = vmul.f32 %v1233, %v1233
        %v1298 = vmul.f32 %v1234, %v1234
        %v1299 = vmul.f32 %v1235, %v1235
        %v1300 = vmul.f32 %v1236, %v1236
        %v1301 = vmul.f32 %v1237, %v1237
        %v1302 = vmul.f32 %v1238, %v1238
        %v1303 = vmul.f32 %v1239, %v1239
        %v1304 = vmul.f32 %v1240, %v1240
        %v1305 = vmul.f32 %v1241, %v1241
        %v1306 = vmul.f32 %v1242, %v1242
        %v1307 = vmul.f32 %v1243, %v1243
        %v1308 = vmul.f32 %v1244, %v1244
        %v1309 = vmul.f32 %v1245, %v1245
        %1310 = vadd.xlane.f32.xlu0 %v1246
        %v1311 = vpop.xlane.xlu0 %1310
        %1312 = vadd.xlane.f32.xlu0 %v1247
        %v1313 = vpop.xlane.xlu0 %1312
        %1314 = vadd.xlane.f32.xlu0 %v1248
        %v1315 = vpop.xlane.xlu0 %1314
        %1316 = vadd.xlane.f32.xlu0 %v1249
        %v1317 = vpop.xlane.xlu0 %1316
        %1318 = vadd.xlane.f32.xlu0 %v1250
        %v1319 = vpop.xlane.xlu0 %1318
        %1320 = vadd.xlane.f32.xlu0 %v1251
        %v1321 = vpop.xlane.xlu0 %1320
        %1322 = vadd.xlane.f32.xlu0 %v1252
        %v1323 = vpop.xlane.xlu0 %1322
        %1324 = vadd.xlane.f32.xlu0 %v1253
        %v1325 = vpop.xlane.xlu0 %1324
        %1326 = vadd.xlane.f32.xlu0 %v1254
        %v1327 = vpop.xlane.xlu0 %1326
        %1328 = vadd.xlane.f32.xlu0 %v1255
        %v1329 = vpop.xlane.xlu0 %1328
        %1330 = vadd.xlane.f32.xlu0 %v1256
        %v1331 = vpop.xlane.xlu0 %1330
        %1332 = vadd.xlane.f32.xlu0 %v1257
        %v1333 = vpop.xlane.xlu0 %1332
        %1334 = vadd.xlane.f32.xlu0 %v1258
        %v1335 = vpop.xlane.xlu0 %1334
        %1336 = vadd.xlane.f32.xlu0 %v1259
        %v1337 = vpop.xlane.xlu0 %1336
        %1338 = vadd.xlane.f32.xlu0 %v1260
        %v1339 = vpop.xlane.xlu0 %1338
        %1340 = vadd.xlane.f32.xlu0 %v1261
        %v1341 = vpop.xlane.xlu0 %1340
        %1342 = vadd.xlane.f32.xlu0 %v1262
        %v1343 = vpop.xlane.xlu0 %1342
        %1344 = vadd.xlane.f32.xlu0 %v1263
        %v1345 = vpop.xlane.xlu0 %1344
        %1346 = vadd.xlane.f32.xlu0 %v1264
        %v1347 = vpop.xlane.xlu0 %1346
        %1348 = vadd.xlane.f32.xlu0 %v1265
        %v1349 = vpop.xlane.xlu0 %1348
        %1350 = vadd.xlane.f32.xlu0 %v1266
        %v1351 = vpop.xlane.xlu0 %1350
        %1352 = vadd.xlane.f32.xlu0 %v1267
        %v1353 = vpop.xlane.xlu0 %1352
        %1354 = vadd.xlane.f32.xlu0 %v1268
        %v1355 = vpop.xlane.xlu0 %1354
        %1356 = vadd.xlane.f32.xlu0 %v1269
        %v1357 = vpop.xlane.xlu0 %1356
        %1358 = vadd.xlane.f32.xlu0 %v1270
        %v1359 = vpop.xlane.xlu0 %1358
        %1360 = vadd.xlane.f32.xlu0 %v1271
        %v1361 = vpop.xlane.xlu0 %1360
        %1362 = vadd.xlane.f32.xlu0 %v1272
        %v1363 = vpop.xlane.xlu0 %1362
        %1364 = vadd.xlane.f32.xlu0 %v1273
        %v1365 = vpop.xlane.xlu0 %1364
        %1366 = vadd.xlane.f32.xlu0 %v1274
        %v1367 = vpop.xlane.xlu0 %1366
        %1368 = vadd.xlane.f32.xlu0 %v1275
        %v1369 = vpop.xlane.xlu0 %1368
        %1370 = vadd.xlane.f32.xlu0 %v1276
        %v1371 = vpop.xlane.xlu0 %1370
        %1372 = vadd.xlane.f32.xlu0 %v1277
        %v1373 = vpop.xlane.xlu0 %1372
        %1374 = vadd.xlane.f32.xlu0 %v1278
        %v1375 = vpop.xlane.xlu0 %1374
        %1376 = vadd.xlane.f32.xlu0 %v1279
        %v1377 = vpop.xlane.xlu0 %1376
        %1378 = vadd.xlane.f32.xlu0 %v1280
        %v1379 = vpop.xlane.xlu0 %1378
        %1380 = vadd.xlane.f32.xlu0 %v1281
        %v1381 = vpop.xlane.xlu0 %1380
        %1382 = vadd.xlane.f32.xlu0 %v1282
        %v1383 = vpop.xlane.xlu0 %1382
        %1384 = vadd.xlane.f32.xlu0 %v1283
        %v1385 = vpop.xlane.xlu0 %1384
        %1386 = vadd.xlane.f32.xlu0 %v1284
        %v1387 = vpop.xlane.xlu0 %1386
        %1388 = vadd.xlane.f32.xlu0 %v1285
        %v1389 = vpop.xlane.xlu0 %1388
        %1390 = vadd.xlane.f32.xlu0 %v1286
        %v1391 = vpop.xlane.xlu0 %1390
        %1392 = vadd.xlane.f32.xlu0 %v1287
        %v1393 = vpop.xlane.xlu0 %1392
        %1394 = vadd.xlane.f32.xlu0 %v1288
        %v1395 = vpop.xlane.xlu0 %1394
        %1396 = vadd.xlane.f32.xlu0 %v1289
        %v1397 = vpop.xlane.xlu0 %1396
        %1398 = vadd.xlane.f32.xlu0 %v1290
        %v1399 = vpop.xlane.xlu0 %1398
        %1400 = vadd.xlane.f32.xlu0 %v1291
        %v1401 = vpop.xlane.xlu0 %1400
        %1402 = vadd.xlane.f32.xlu0 %v1292
        %v1403 = vpop.xlane.xlu0 %1402
        %1404 = vadd.xlane.f32.xlu0 %v1293
        %v1405 = vpop.xlane.xlu0 %1404
        %1406 = vadd.xlane.f32.xlu0 %v1294
        %v1407 = vpop.xlane.xlu0 %1406
        %1408 = vadd.xlane.f32.xlu0 %v1295
        %v1409 = vpop.xlane.xlu0 %1408
        %1410 = vadd.xlane.f32.xlu0 %v1296
        %v1411 = vpop.xlane.xlu0 %1410
        %1412 = vadd.xlane.f32.xlu0 %v1297
        %v1413 = vpop.xlane.xlu0 %1412
        %1414 = vadd.xlane.f32.xlu0 %v1298
        %v1415 = vpop.xlane.xlu0 %1414
        %1416 = vadd.xlane.f32.xlu0 %v1299
        %v1417 = vpop.xlane.xlu0 %1416
        %1418 = vadd.xlane.f32.xlu0 %v1300
        %v1419 = vpop.xlane.xlu0 %1418
        %1420 = vadd.xlane.f32.xlu0 %v1301
        %v1421 = vpop.xlane.xlu0 %1420
        %1422 = vadd.xlane.f32.xlu0 %v1302
        %v1423 = vpop.xlane.xlu0 %1422
        %1424 = vadd.xlane.f32.xlu0 %v1303
        %v1425 = vpop.xlane.xlu0 %1424
        %1426 = vadd.xlane.f32.xlu0 %v1304
        %v1427 = vpop.xlane.xlu0 %1426
        %1428 = vadd.xlane.f32.xlu0 %v1305
        %v1429 = vpop.xlane.xlu0 %1428
        %1430 = vadd.xlane.f32.xlu0 %v1306
        %v1431 = vpop.xlane.xlu0 %1430
        %1432 = vadd.xlane.f32.xlu0 %v1307
        %v1433 = vpop.xlane.xlu0 %1432
        %1434 = vadd.xlane.f32.xlu0 %v1308
        %v1435 = vpop.xlane.xlu0 %1434
        %1436 = vadd.xlane.f32.xlu0 %v1309
        %v1437 = vpop.xlane.xlu0 %1436
        %v1438 = vmul.f32 %v1311, %v1117
        %v1439 = vmul.f32 %v1313, %v1117
        %v1440 = vmul.f32 %v1315, %v1117
        %v1441 = vmul.f32 %v1317, %v1117
        %v1442 = vmul.f32 %v1319, %v1117
        %v1443 = vmul.f32 %v1321, %v1117
        %v1444 = vmul.f32 %v1323, %v1117
        %v1445 = vmul.f32 %v1325, %v1117
        %v1446 = vmul.f32 %v1327, %v1117
        %v1447 = vmul.f32 %v1329, %v1117
        %v1448 = vmul.f32 %v1331, %v1117
        %v1449 = vmul.f32 %v1333, %v1117
        %v1450 = vmul.f32 %v1335, %v1117
        %v1451 = vmul.f32 %v1337, %v1117
        %v1452 = vmul.f32 %v1339, %v1117
        %v1453 = vmul.f32 %v1341, %v1117
        %v1454 = vmul.f32 %v1343, %v1117
        %v1455 = vmul.f32 %v1345, %v1117
        %v1456 = vmul.f32 %v1347, %v1117
        %v1457 = vmul.f32 %v1349, %v1117
        %v1458 = vmul.f32 %v1351, %v1117
        %v1459 = vmul.f32 %v1353, %v1117
        %v1460 = vmul.f32 %v1355, %v1117
        %v1461 = vmul.f32 %v1357, %v1117
        %v1462 = vmul.f32 %v1359, %v1117
        %v1463 = vmul.f32 %v1361, %v1117
        %v1464 = vmul.f32 %v1363, %v1117
        %v1465 = vmul.f32 %v1365, %v1117
        %v1466 = vmul.f32 %v1367, %v1117
        %v1467 = vmul.f32 %v1369, %v1117
        %v1468 = vmul.f32 %v1371, %v1117
        %v1469 = vmul.f32 %v1373, %v1117
        %v1470 = vmul.f32 %v1375, %v1117
        %v1471 = vmul.f32 %v1377, %v1117
        %v1472 = vmul.f32 %v1379, %v1117
        %v1473 = vmul.f32 %v1381, %v1117
        %v1474 = vmul.f32 %v1383, %v1117
        %v1475 = vmul.f32 %v1385, %v1117
        %v1476 = vmul.f32 %v1387, %v1117
        %v1477 = vmul.f32 %v1389, %v1117
        %v1478 = vmul.f32 %v1391, %v1117
        %v1479 = vmul.f32 %v1393, %v1117
        %v1480 = vmul.f32 %v1395, %v1117
        %v1481 = vmul.f32 %v1397, %v1117
        %v1482 = vmul.f32 %v1399, %v1117
        %v1483 = vmul.f32 %v1401, %v1117
        %v1484 = vmul.f32 %v1403, %v1117
        %v1485 = vmul.f32 %v1405, %v1117
        %v1486 = vmul.f32 %v1407, %v1117
        %v1487 = vmul.f32 %v1409, %v1117
        %v1488 = vmul.f32 %v1411, %v1117
        %v1489 = vmul.f32 %v1413, %v1117
        %v1490 = vmul.f32 %v1415, %v1117
        %v1491 = vmul.f32 %v1417, %v1117
        %v1492 = vmul.f32 %v1419, %v1117
        %v1493 = vmul.f32 %v1421, %v1117
        %v1494 = vmul.f32 %v1423, %v1117
        %v1495 = vmul.f32 %v1425, %v1117
        %v1496 = vmul.f32 %v1427, %v1117
        %v1497 = vmul.f32 %v1429, %v1117
        %v1498 = vmul.f32 %v1431, %v1117
        %v1499 = vmul.f32 %v1433, %v1117
        %v1500 = vmul.f32 %v1435, %v1117
        %v1501 = vmul.f32 %v1437, %v1117
        %v1502 = vadd.f32 %v1438, 1e-05
        %v1503 = vadd.f32 %v1439, 1e-05
        %v1504 = vadd.f32 %v1440, 1e-05
        %v1505 = vadd.f32 %v1441, 1e-05
        %v1506 = vadd.f32 %v1442, 1e-05
        %v1507 = vadd.f32 %v1443, 1e-05
        %v1508 = vadd.f32 %v1444, 1e-05
        %v1509 = vadd.f32 %v1445, 1e-05
        %v1510 = vadd.f32 %v1446, 1e-05
        %v1511 = vadd.f32 %v1447, 1e-05
        %v1512 = vadd.f32 %v1448, 1e-05
        %v1513 = vadd.f32 %v1449, 1e-05
        %v1514 = vadd.f32 %v1450, 1e-05
        %v1515 = vadd.f32 %v1451, 1e-05
        %v1516 = vadd.f32 %v1452, 1e-05
        %v1517 = vadd.f32 %v1453, 1e-05
        %v1518 = vadd.f32 %v1454, 1e-05
        %v1519 = vadd.f32 %v1455, 1e-05
        %v1520 = vadd.f32 %v1456, 1e-05
        %v1521 = vadd.f32 %v1457, 1e-05
        %v1522 = vadd.f32 %v1458, 1e-05
        %v1523 = vadd.f32 %v1459, 1e-05
        %v1524 = vadd.f32 %v1460, 1e-05
        %v1525 = vadd.f32 %v1461, 1e-05
        %v1526 = vadd.f32 %v1462, 1e-05
        %v1527 = vadd.f32 %v1463, 1e-05
        %v1528 = vadd.f32 %v1464, 1e-05
        %v1529 = vadd.f32 %v1465, 1e-05
        %v1530 = vadd.f32 %v1466, 1e-05
        %v1531 = vadd.f32 %v1467, 1e-05
        %v1532 = vadd.f32 %v1468, 1e-05
        %v1533 = vadd.f32 %v1469, 1e-05
        %v1534 = vadd.f32 %v1470, 1e-05
        %v1535 = vadd.f32 %v1471, 1e-05
        %v1536 = vadd.f32 %v1472, 1e-05
        %v1537 = vadd.f32 %v1473, 1e-05
        %v1538 = vadd.f32 %v1474, 1e-05
        %v1539 = vadd.f32 %v1475, 1e-05
        %v1540 = vadd.f32 %v1476, 1e-05
        %v1541 = vadd.f32 %v1477, 1e-05
        %v1542 = vadd.f32 %v1478, 1e-05
        %v1543 = vadd.f32 %v1479, 1e-05
        %v1544 = vadd.f32 %v1480, 1e-05
        %v1545 = vadd.f32 %v1481, 1e-05
        %v1546 = vadd.f32 %v1482, 1e-05
        %v1547 = vadd.f32 %v1483, 1e-05
        %v1548 = vadd.f32 %v1484, 1e-05
        %v1549 = vadd.f32 %v1485, 1e-05
        %v1550 = vadd.f32 %v1486, 1e-05
        %v1551 = vadd.f32 %v1487, 1e-05
        %v1552 = vadd.f32 %v1488, 1e-05
        %v1553 = vadd.f32 %v1489, 1e-05
        %v1554 = vadd.f32 %v1490, 1e-05
        %v1555 = vadd.f32 %v1491, 1e-05
        %v1556 = vadd.f32 %v1492, 1e-05
        %v1557 = vadd.f32 %v1493, 1e-05
        %v1558 = vadd.f32 %v1494, 1e-05
        %v1559 = vadd.f32 %v1495, 1e-05
        %v1560 = vadd.f32 %v1496, 1e-05
        %v1561 = vadd.f32 %v1497, 1e-05
        %v1562 = vadd.f32 %v1498, 1e-05
        %v1563 = vadd.f32 %v1499, 1e-05
        %v1564 = vadd.f32 %v1500, 1e-05
        %v1565 = vadd.f32 %v1501, 1e-05
        %v1566 = vrsqrt.pop %v1502
        %v1567 = vrsqrt.pop %v1503
        %v1568 = vrsqrt.pop %v1504
        %v1569 = vrsqrt.pop %v1505
        %v1570 = vrsqrt.pop %v1506
        %v1571 = vrsqrt.pop %v1507
        %v1572 = vrsqrt.pop %v1508
        %v1573 = vrsqrt.pop %v1509
        %v1574 = vrsqrt.pop %v1510
        %v1575 = vrsqrt.pop %v1511
        %v1576 = vrsqrt.pop %v1512
        %v1577 = vrsqrt.pop %v1513
        %v1578 = vrsqrt.pop %v1514
        %v1579 = vrsqrt.pop %v1515
        %v1580 = vrsqrt.pop %v1516
        %v1581 = vrsqrt.pop %v1517
        %v1582 = vrsqrt.pop %v1518
        %v1583 = vrsqrt.pop %v1519
        %v1584 = vrsqrt.pop %v1520
        %v1585 = vrsqrt.pop %v1521
        %v1586 = vrsqrt.pop %v1522
        %v1587 = vrsqrt.pop %v1523
        %v1588 = vrsqrt.pop %v1524
        %v1589 = vrsqrt.pop %v1525
        %v1590 = vrsqrt.pop %v1526
        %v1591 = vrsqrt.pop %v1527
        %v1592 = vrsqrt.pop %v1528
        %v1593 = vrsqrt.pop %v1529
        %v1594 = vrsqrt.pop %v1530
        %v1595 = vrsqrt.pop %v1531
        %v1596 = vrsqrt.pop %v1532
        %v1597 = vrsqrt.pop %v1533
        %v1598 = vrsqrt.pop %v1534
        %v1599 = vrsqrt.pop %v1535
        %v1600 = vrsqrt.pop %v1536
        %v1601 = vrsqrt.pop %v1537
        %v1602 = vrsqrt.pop %v1538
        %v1603 = vrsqrt.pop %v1539
        %v1604 = vrsqrt.pop %v1540
        %v1605 = vrsqrt.pop %v1541
        %v1606 = vrsqrt.pop %v1542
        %v1607 = vrsqrt.pop %v1543
        %v1608 = vrsqrt.pop %v1544
        %v1609 = vrsqrt.pop %v1545
        %v1610 = vrsqrt.pop %v1546
        %v1611 = vrsqrt.pop %v1547
        %v1612 = vrsqrt.pop %v1548
        %v1613 = vrsqrt.pop %v1549
        %v1614 = vrsqrt.pop %v1550
        %v1615 = vrsqrt.pop %v1551
        %v1616 = vrsqrt.pop %v1552
        %v1617 = vrsqrt.pop %v1553
        %v1618 = vrsqrt.pop %v1554
        %v1619 = vrsqrt.pop %v1555
        %v1620 = vrsqrt.pop %v1556
        %v1621 = vrsqrt.pop %v1557
        %v1622 = vrsqrt.pop %v1558
        %v1623 = vrsqrt.pop %v1559
        %v1624 = vrsqrt.pop %v1560
        %v1625 = vrsqrt.pop %v1561
        %v1626 = vrsqrt.pop %v1562
        %v1627 = vrsqrt.pop %v1563
        %v1628 = vrsqrt.pop %v1564
        %v1629 = vrsqrt.pop %v1565
        %v1630 = vmul.f32 %v1182, %v1566
        %v1631 = vmul.f32 %v1183, %v1567
        %v1632 = vmul.f32 %v1184, %v1568
        %v1633 = vmul.f32 %v1185, %v1569
        %v1634 = vmul.f32 %v1186, %v1570
        %v1635 = vmul.f32 %v1187, %v1571
        %v1636 = vmul.f32 %v1188, %v1572
        %v1637 = vmul.f32 %v1189, %v1573
        %v1638 = vmul.f32 %v1190, %v1574
        %v1639 = vmul.f32 %v1191, %v1575
        %v1640 = vmul.f32 %v1192, %v1576
        %v1641 = vmul.f32 %v1193, %v1577
        %v1642 = vmul.f32 %v1194, %v1578
        %v1643 = vmul.f32 %v1195, %v1579
        %v1644 = vmul.f32 %v1196, %v1580
        %v1645 = vmul.f32 %v1197, %v1581
        %v1646 = vmul.f32 %v1198, %v1582
        %v1647 = vmul.f32 %v1199, %v1583
        %v1648 = vmul.f32 %v1200, %v1584
        %v1649 = vmul.f32 %v1201, %v1585
        %v1650 = vmul.f32 %v1202, %v1586
        %v1651 = vmul.f32 %v1203, %v1587
        %v1652 = vmul.f32 %v1204, %v1588
        %v1653 = vmul.f32 %v1205, %v1589
        %v1654 = vmul.f32 %v1206, %v1590
        %v1655 = vmul.f32 %v1207, %v1591
        %v1656 = vmul.f32 %v1208, %v1592
        %v1657 = vmul.f32 %v1209, %v1593
        %v1658 = vmul.f32 %v1210, %v1594
        %v1659 = vmul.f32 %v1211, %v1595
        %v1660 = vmul.f32 %v1212, %v1596
        %v1661 = vmul.f32 %v1213, %v1597
        %v1662 = vmul.f32 %v1214, %v1598
        %v1663 = vmul.f32 %v1215, %v1599
        %v1664 = vmul.f32 %v1216, %v1600
        %v1665 = vmul.f32 %v1217, %v1601
        %v1666 = vmul.f32 %v1218, %v1602
        %v1667 = vmul.f32 %v1219, %v1603
        %v1668 = vmul.f32 %v1220, %v1604
        %v1669 = vmul.f32 %v1221, %v1605
        %v1670 = vmul.f32 %v1222, %v1606
        %v1671 = vmul.f32 %v1223, %v1607
        %v1672 = vmul.f32 %v1224, %v1608
        %v1673 = vmul.f32 %v1225, %v1609
        %v1674 = vmul.f32 %v1226, %v1610
        %v1675 = vmul.f32 %v1227, %v1611
        %v1676 = vmul.f32 %v1228, %v1612
        %v1677 = vmul.f32 %v1229, %v1613
        %v1678 = vmul.f32 %v1230, %v1614
        %v1679 = vmul.f32 %v1231, %v1615
        %v1680 = vmul.f32 %v1232, %v1616
        %v1681 = vmul.f32 %v1233, %v1617
        %v1682 = vmul.f32 %v1234, %v1618
        %v1683 = vmul.f32 %v1235, %v1619
        %v1684 = vmul.f32 %v1236, %v1620
        %v1685 = vmul.f32 %v1237, %v1621
        %v1686 = vmul.f32 %v1238, %v1622
        %v1687 = vmul.f32 %v1239, %v1623
        %v1688 = vmul.f32 %v1240, %v1624
        %v1689 = vmul.f32 %v1241, %v1625
        %v1690 = vmul.f32 %v1242, %v1626
        %v1691 = vmul.f32 %v1243, %v1627
        %v1692 = vmul.f32 %v1244, %v1628
        %v1693 = vmul.f32 %v1245, %v1629
        %v1694 = vld [vmem:[#allocation7] sm:$0x1]
        %v1696 = vlaneseq
        %v1697 = vshrl.u32 %v1696, 7
        %v1698 = vsub.s32 0, %v1697
        %v1699 = vrot.slane %v1694, %v1698
        %v1701 = vmul.f32 %v1630, %v1699
        %v1702 = vmul.f32 %v1631, %v1699
        %v1703 = vmul.f32 %v1632, %v1699
        %v1704 = vmul.f32 %v1633, %v1699
        %v1705 = vmul.f32 %v1634, %v1699
        %v1706 = vmul.f32 %v1635, %v1699
        %v1707 = vmul.f32 %v1636, %v1699
        %v1708 = vmul.f32 %v1637, %v1699
        %v1709 = vmul.f32 %v1638, %v1699
        %v1710 = vmul.f32 %v1639, %v1699
        %v1711 = vmul.f32 %v1640, %v1699
        %v1712 = vmul.f32 %v1641, %v1699
        %v1713 = vmul.f32 %v1642, %v1699
        %v1714 = vmul.f32 %v1643, %v1699
        %v1715 = vmul.f32 %v1644, %v1699
        %v1716 = vmul.f32 %v1645, %v1699
        %v1717 = vmul.f32 %v1646, %v1699
        %v1718 = vmul.f32 %v1647, %v1699
        %v1719 = vmul.f32 %v1648, %v1699
        %v1720 = vmul.f32 %v1649, %v1699
        %v1721 = vmul.f32 %v1650, %v1699
        %v1722 = vmul.f32 %v1651, %v1699
        %v1723 = vmul.f32 %v1652, %v1699
        %v1724 = vmul.f32 %v1653, %v1699
        %v1725 = vmul.f32 %v1654, %v1699
        %v1726 = vmul.f32 %v1655, %v1699
        %v1727 = vmul.f32 %v1656, %v1699
        %v1728 = vmul.f32 %v1657, %v1699
        %v1729 = vmul.f32 %v1658, %v1699
        %v1730 = vmul.f32 %v1659, %v1699
        %v1731 = vmul.f32 %v1660, %v1699
        %v1732 = vmul.f32 %v1661, %v1699
        %v1733 = vmul.f32 %v1662, %v1699
        %v1734 = vmul.f32 %v1663, %v1699
        %v1735 = vmul.f32 %v1664, %v1699
        %v1736 = vmul.f32 %v1665, %v1699
        %v1737 = vmul.f32 %v1666, %v1699
        %v1738 = vmul.f32 %v1667, %v1699
        %v1739 = vmul.f32 %v1668, %v1699
        %v1740 = vmul.f32 %v1669, %v1699
        %v1741 = vmul.f32 %v1670, %v1699
        %v1742 = vmul.f32 %v1671, %v1699
        %v1743 = vmul.f32 %v1672, %v1699
        %v1744 = vmul.f32 %v1673, %v1699
        %v1745 = vmul.f32 %v1674, %v1699
        %v1746 = vmul.f32 %v1675, %v1699
        %v1747 = vmul.f32 %v1676, %v1699
        %v1748 = vmul.f32 %v1677, %v1699
        %v1749 = vmul.f32 %v1678, %v1699
        %v1750 = vmul.f32 %v1679, %v1699
        %v1751 = vmul.f32 %v1680, %v1699
        %v1752 = vmul.f32 %v1681, %v1699
        %v1753 = vmul.f32 %v1682, %v1699
        %v1754 = vmul.f32 %v1683, %v1699
        %v1755 = vmul.f32 %v1684, %v1699
        %v1756 = vmul.f32 %v1685, %v1699
        %v1757 = vmul.f32 %v1686, %v1699
        %v1758 = vmul.f32 %v1687, %v1699
        %v1759 = vmul.f32 %v1688, %v1699
        %v1760 = vmul.f32 %v1689, %v1699
        %v1761 = vmul.f32 %v1690, %v1699
        %v1762 = vmul.f32 %v1691, %v1699
        %v1763 = vmul.f32 %v1692, %v1699
        %v1764 = vmul.f32 %v1693, %v1699
        %v1765 = vld [vmem:[#allocation8] sm:$0x1]
        %v1767 = vlaneseq
        %v1768 = vshrl.u32 %v1767, 7
        %v1769 = vsub.s32 0, %v1768
        %v1770 = vrot.slane %v1765, %v1769
        %v1772 = vadd.f32 %v1701, %v1770
        %v1773 = vadd.f32 %v1702, %v1770
        %v1774 = vadd.f32 %v1703, %v1770
        %v1775 = vadd.f32 %v1704, %v1770
        %v1776 = vadd.f32 %v1705, %v1770
        %v1777 = vadd.f32 %v1706, %v1770
        %v1778 = vadd.f32 %v1707, %v1770
        %v1779 = vadd.f32 %v1708, %v1770
        %v1780 = vadd.f32 %v1709, %v1770
        %v1781 = vadd.f32 %v1710, %v1770
        %v1782 = vadd.f32 %v1711, %v1770
        %v1783 = vadd.f32 %v1712, %v1770
        %v1784 = vadd.f32 %v1713, %v1770
        %v1785 = vadd.f32 %v1714, %v1770
        %v1786 = vadd.f32 %v1715, %v1770
        %v1787 = vadd.f32 %v1716, %v1770
        %v1788 = vadd.f32 %v1717, %v1770
        %v1789 = vadd.f32 %v1718, %v1770
        %v1790 = vadd.f32 %v1719, %v1770
        %v1791 = vadd.f32 %v1720, %v1770
        %v1792 = vadd.f32 %v1721, %v1770
        %v1793 = vadd.f32 %v1722, %v1770
        %v1794 = vadd.f32 %v1723, %v1770
        %v1795 = vadd.f32 %v1724, %v1770
        %v1796 = vadd.f32 %v1725, %v1770
        %v1797 = vadd.f32 %v1726, %v1770
        %v1798 = vadd.f32 %v1727, %v1770
        %v1799 = vadd.f32 %v1728, %v1770
        %v1800 = vadd.f32 %v1729, %v1770
        %v1801 = vadd.f32 %v1730, %v1770
        %v1802 = vadd.f32 %v1731, %v1770
        %v1803 = vadd.f32 %v1732, %v1770
        %v1804 = vadd.f32 %v1733, %v1770
        %v1805 = vadd.f32 %v1734, %v1770
        %v1806 = vadd.f32 %v1735, %v1770
        %v1807 = vadd.f32 %v1736, %v1770
        %v1808 = vadd.f32 %v1737, %v1770
        %v1809 = vadd.f32 %v1738, %v1770
        %v1810 = vadd.f32 %v1739, %v1770
        %v1811 = vadd.f32 %v1740, %v1770
        %v1812 = vadd.f32 %v1741, %v1770
        %v1813 = vadd.f32 %v1742, %v1770
        %v1814 = vadd.f32 %v1743, %v1770
        %v1815 = vadd.f32 %v1744, %v1770
        %v1816 = vadd.f32 %v1745, %v1770
        %v1817 = vadd.f32 %v1746, %v1770
        %v1818 = vadd.f32 %v1747, %v1770
        %v1819 = vadd.f32 %v1748, %v1770
        %v1820 = vadd.f32 %v1749, %v1770
        %v1821 = vadd.f32 %v1750, %v1770
        %v1822 = vadd.f32 %v1751, %v1770
        %v1823 = vadd.f32 %v1752, %v1770
        %v1824 = vadd.f32 %v1753, %v1770
        %v1825 = vadd.f32 %v1754, %v1770
        %v1826 = vadd.f32 %v1755, %v1770
        %v1827 = vadd.f32 %v1756, %v1770
        %v1828 = vadd.f32 %v1757, %v1770
        %v1829 = vadd.f32 %v1758, %v1770
        %v1830 = vadd.f32 %v1759, %v1770
        %v1831 = vadd.f32 %v1760, %v1770
        %v1832 = vadd.f32 %v1761, %v1770
        %v1833 = vadd.f32 %v1762, %v1770
        %v1834 = vadd.f32 %v1763, %v1770
        %v1835 = vadd.f32 %v1764, %v1770
        %1836 = vst [vmem:[%s256] sm:$0xff] %v1772
        %1837 = vst [vmem:[%s256 + $0x8] sm:$0xff] %v1773
        %1838 = vst [vmem:[%s256 + $0x10] sm:$0xff] %v1774
        %1839 = vst [vmem:[%s256 + $0x18] sm:$0xff] %v1775
        %1840 = vst [vmem:[%s256 + $0x20] sm:$0xff] %v1776
        %1841 = vst [vmem:[%s256 + $0x28] sm:$0xff] %v1777
        %1842 = vst [vmem:[%s256 + $0x30] sm:$0xff] %v1778
        %1843 = vst [vmem:[%s256 + $0x38] sm:$0xff] %v1779
        %1844 = vst [vmem:[%s256 + $0x40] sm:$0xff] %v1780
        %1845 = vst [vmem:[%s256 + $0x48] sm:$0xff] %v1781
        %1846 = vst [vmem:[%s256 + $0x50] sm:$0xff] %v1782
        %1847 = vst [vmem:[%s256 + $0x58] sm:$0xff] %v1783
        %1848 = vst [vmem:[%s256 + $0x60] sm:$0xff] %v1784
        %1849 = vst [vmem:[%s256 + $0x68] sm:$0xff] %v1785
        %1850 = vst [vmem:[%s256 + $0x70] sm:$0xff] %v1786
        %1851 = vst [vmem:[%s256 + $0x78] sm:$0xff] %v1787
        %1852 = vst [vmem:[%s256 + $0x80] sm:$0xff] %v1788
        %1853 = vst [vmem:[%s256 + $0x88] sm:$0xff] %v1789
        %1854 = vst [vmem:[%s256 + $0x90] sm:$0xff] %v1790
        %1855 = vst [vmem:[%s256 + $0x98] sm:$0xff] %v1791
        %1856 = vst [vmem:[%s256 + $0xa0] sm:$0xff] %v1792
        %1857 = vst [vmem:[%s256 + $0xa8] sm:$0xff] %v1793
        %1858 = vst [vmem:[%s256 + $0xb0] sm:$0xff] %v1794
        %1859 = vst [vmem:[%s256 + $0xb8] sm:$0xff] %v1795
        %1860 = vst [vmem:[%s256 + $0xc0] sm:$0xff] %v1796
        %1861 = vst [vmem:[%s256 + $0xc8] sm:$0xff] %v1797
        %1862 = vst [vmem:[%s256 + $0xd0] sm:$0xff] %v1798
        %1863 = vst [vmem:[%s256 + $0xd8] sm:$0xff] %v1799
        %1864 = vst [vmem:[%s256 + $0xe0] sm:$0xff] %v1800
        %1865 = vst [vmem:[%s256 + $0xe8] sm:$0xff] %v1801
        %1866 = vst [vmem:[%s256 + $0xf0] sm:$0xff] %v1802
        %1867 = vst [vmem:[%s256 + $0xf8] sm:$0xff] %v1803
        %1868 = vst [vmem:[%s256 + $0x100] sm:$0xff] %v1804
        %1869 = vst [vmem:[%s256 + $0x108] sm:$0xff] %v1805
        %1870 = vst [vmem:[%s256 + $0x110] sm:$0xff] %v1806
        %1871 = vst [vmem:[%s256 + $0x118] sm:$0xff] %v1807
        %1872 = vst [vmem:[%s256 + $0x120] sm:$0xff] %v1808
        %1873 = vst [vmem:[%s256 + $0x128] sm:$0xff] %v1809
        %1874 = vst [vmem:[%s256 + $0x130] sm:$0xff] %v1810
        %1875 = vst [vmem:[%s256 + $0x138] sm:$0xff] %v1811
        %1876 = vst [vmem:[%s256 + $0x140] sm:$0xff] %v1812
        %1877 = vst [vmem:[%s256 + $0x148] sm:$0xff] %v1813
        %1878 = vst [vmem:[%s256 + $0x150] sm:$0xff] %v1814
        %1879 = vst [vmem:[%s256 + $0x158] sm:$0xff] %v1815
        %1880 = vst [vmem:[%s256 + $0x160] sm:$0xff] %v1816
        %1881 = vst [vmem:[%s256 + $0x168] sm:$0xff] %v1817
        %1882 = vst [vmem:[%s256 + $0x170] sm:$0xff] %v1818
        %1883 = vst [vmem:[%s256 + $0x178] sm:$0xff] %v1819
        %1884 = vst [vmem:[%s256 + $0x180] sm:$0xff] %v1820
        %1885 = vst [vmem:[%s256 + $0x188] sm:$0xff] %v1821
        %1886 = vst [vmem:[%s256 + $0x190] sm:$0xff] %v1822
        %1887 = vst [vmem:[%s256 + $0x198] sm:$0xff] %v1823
        %1888 = vst [vmem:[%s256 + $0x1a0] sm:$0xff] %v1824
        %1889 = vst [vmem:[%s256 + $0x1a8] sm:$0xff] %v1825
        %1890 = vst [vmem:[%s256 + $0x1b0] sm:$0xff] %v1826
        %1891 = vst [vmem:[%s256 + $0x1b8] sm:$0xff] %v1827
        %1892 = vst [vmem:[%s256 + $0x1c0] sm:$0xff] %v1828
        %1893 = vst [vmem:[%s256 + $0x1c8] sm:$0xff] %v1829
        %1894 = vst [vmem:[%s256 + $0x1d0] sm:$0xff] %v1830
        %1895 = vst [vmem:[%s256 + $0x1d8] sm:$0xff] %v1831
        %1896 = vst [vmem:[%s256 + $0x1e0] sm:$0xff] %v1832
        %1897 = vst [vmem:[%s256 + $0x1e8] sm:$0xff] %v1833
        %1898 = vst [vmem:[%s256 + $0x1f0] sm:$0xff] %v1834
        %1899 = vst [vmem:[%s256 + $0x1f8] sm:$0xff] %v1835
        %s1900 = sand.u32 %s120, 1
        %s1901 = scalar_lea.sflag [#allocation4], %s1900
        %s1902 = sand.u32 %s120, 1
        %s1903 = smul.addr %s1902, 512
        %s1904 = scalar_lea.vmem [#allocation10], %s1903
        // Predicated region
        $region53: #{tpu_custom_call.1} parent=35 // pred_check
          %p1905 = pneg %p130
        $region54: #{tpu_custom_call.1} parent=35 // pred_check_branch
          %1907 = sbr.rel (%p1905) target = $region56
        $region55: #{tpu_custom_call.1} parent=35 // pred_region
          %s1908 = smul.u32 64, %s23
          %s1910 = ssub.s32 8192, 8192
          %1911 = vsyncadd %s1901, %s1910
          %s1912 = smul.addr %s1908, 128
          %s1913 = scalar_lea.hbm %s4, %s1912
          %s1914 = sshll.u32 %s1904, 4
          %s1915 = int_to_ptr.vmem [resolvable:$true] %s1914
          %1920 = dma.vmem_to_hbm [thread:$0]  %s1915, 8192, %s1913, %s1901, 128, 128, 8
        $region56: #{tpu_custom_call.1} parent=35 // pred_fallthru
          _
      $region36: #{tpu_custom_call.1} parent=5 // pred_fallthru
        _
      %p1921 = scmp.le.s32.totalorder 2, %s18
      // Predicated region
      $region57: #{tpu_custom_call.1} parent=5 // pred_check
        %p1922 = pneg %p1921
      $region58: #{tpu_custom_call.1} parent=5 // pred_check_branch
        %1924 = sbr.rel (%p1922) target = $region60
      $region59: #{tpu_custom_call.1} parent=5 // pred_region
        %s1925 = ssub.s32 %s18, 2
        // Predicated region
        $region61: #{tpu_custom_call.1} parent=59 // pred_check
          %p1926 = pneg %p136
        $region62: #{tpu_custom_call.1} parent=59 // pred_check_branch
          %1928 = sbr.rel (%p1926) target = $region64
        $region63: #{tpu_custom_call.1} parent=59 // pred_region
          %s1929 = sand.u32 %s121, 1
          %s1930 = scalar_lea.sflag [#allocation4], %s1929
          %s1931 = sand.u32 %s121, 1
          %s1932 = smul.addr %s1931, 512
          %s1933 = scalar_lea.vmem [#allocation10], %s1932
          %1934 = dma.done %s1930, 8192
        $region64: #{tpu_custom_call.1} parent=59 // pred_fallthru
          _
      $region60: #{tpu_custom_call.1} parent=5 // pred_fallthru
        _
    $region6: #{tpu_custom_call.1} parent=1 // loop_footer
      %s22 = sadd.s32 1, %s18
    $region7: #{tpu_custom_call.1} parent=1 // loop_footer_branch
      %17 = sbr.rel target = $region3
    $region8: #{tpu_custom_call.1} parent=1 // loop_exit
      _
    %1935 = vsyncpa [#allocation3], 1
    %s1936 = scalar_lea.sflag [#allocation3], 1
    %1937 = vsyncpa %s1936, 1
    %1938 = vsyncpa [#allocation6], 1
    %1939 = vsyncpa [#allocation9], 1
    %1940 = vsyncpa [#allocation4], 1
    %s1941 = scalar_lea.sflag [#allocation4], 1
    %1942 = vsyncpa %s1941, 1

</llo_original>
